<compile_context>
chip_gen: v5e
topology: v5e:2x2
jax: 0.10.0
libtpu: 0.0.40
codegen_flags: <defaults>
</compile_context>

<pallas_src>
import functools

import jax
import jax.numpy as jnp
from jax.experimental import pallas as pl
from jax.experimental.pallas import tpu as pltpu

# ----------------------------- configuration --------------------------------
D_HIDN = 256
N_HEAD = 4
D_HEAD = 64
D_PROJ = N_HEAD * D_HEAD          # 256
MASK_NEG = -1.0e9


# --------------------------- block-size selection ----------------------------
def _pick_batch_block(B, S, target_rows=512, max_rows=2048):
    """Pick BB (batch elements per grid step).

    Constraints: BB divides B; the bf16 row block BB*S is 16-sublane aligned
    (or full extent); BB*S <= max_rows.  Prefers >= 2 batch grid steps so the
    'parallel' batch axis can be sharded over v7x's two TensorCores, then the
    smallest BB with BB*S >= target_rows (fills the MXU M dim / amortizes the
    ~0.35us per-grid-step overhead)."""
    candidates = [bb for bb in range(1, B + 1)
                  if B % bb == 0 and ((bb * S) % 16 == 0 or bb == B)
                  and bb * S <= max_rows]
    if not candidates:
        return B                  # full-extent block: always legal
    multi = [bb for bb in candidates if B // bb >= 2]
    pool = multi if multi else candidates
    for bb in pool:
        if bb * S >= target_rows:
            return bb
    return pool[-1]


def _vmem_limit_bytes():
    """~75% of physical VMEM, clamped to [32 MiB, 96 MiB]."""
    cap = 64 * 1024 * 1024
    try:
        info = pltpu.get_tpu_info()
        cap = getattr(info, "vmem_capacity_bytes", cap) or cap
    except Exception:
        pass
    return max(32 << 20, min((cap * 3) // 4, 96 << 20))


# ------------------------------- kernel body ----------------------------------
def _make_kernel(BB, S, with_prob, fused):
    """One grid step == one (batch block, head).  All matmuls are 2D or
    single-leading-batch-dim dot_generals (known-good Mosaic lowering)."""
    n_x = 1 if fused else 3

    def kernel(*refs):
        x_refs = refs[:n_x]
        (bias_ref, wq_ref, bq_ref, wk_ref, bk_ref, wv_ref, bv_ref,
         wo_ref, bo_ref) = refs[n_x:n_x + 9]
        out_ref = refs[n_x + 9]
        prob_ref = refs[n_x + 10] if with_prob else None

        h = pl.program_id(1)

        xq = x_refs[0][...]                                   # (BB*S, D_HIDN) bf16
        xk = xq if fused else x_refs[1][...]
        xv = xq if fused else x_refs[2][...]

        def proj(x, w_ref, b_ref):
            # (BB*S, 256) @ (256, 64) on the MXU, f32 accumulate, bias in f32.
            y = jnp.dot(x, w_ref[0], preferred_element_type=jnp.float32) + b_ref[0]
            return y.reshape(BB, S, D_HEAD).astype(jnp.bfloat16)

        q = proj(xq, wq_ref, bq_ref)        # 1/sqrt(d_head) pre-folded into wq/bq
        k = proj(xk, wk_ref, bk_ref)
        v = proj(xv, wv_ref, bv_ref)

        # Scores for this head: contract over d with no explicit k.T (no XLU
        # transpose); additive key-padding bias broadcast over the query dim.
        scores = jnp.einsum("bqd,bkd->bqk", q, k,
                            preferred_element_type=jnp.float32) + bias_ref[...]
        m = jnp.max(scores, axis=-1, keepdims=True)
        e = jnp.exp(scores - m)
        # approx reciprocal -> EUP slot; prob rows sum to 1 within ~1e-3.
        p = e * pl.reciprocal(jnp.sum(e, axis=-1, keepdims=True), approx=True)

        # TODO(synk): nn.Dropout on attn_prob / output is an inference no-op;
        # training-mode dropout is not implemented.
        if prob_ref is not None:
            prob_ref[...] = p.reshape(BB, 1, S, S).astype(prob_ref.dtype)

        ctx = jnp.einsum("bqk,bkd->bqd", p.astype(jnp.bfloat16), v,
                         preferred_element_type=jnp.float32)   # (BB, S, D_HEAD)

        # Output projection distributed over heads: out = sum_h ctx_h @ Wo_h + bo.
        part = jnp.dot(ctx.reshape(BB * S, D_HEAD).astype(jnp.bfloat16), wo_ref[0],
                       preferred_element_type=jnp.float32)      # (BB*S, D_HIDN)

        @pl.when(h == 0)
        def _():
            out_ref[...] = part + bo_ref[...]

        @pl.when(h != 0)
        def _():
            out_ref[...] += part

    return kernel


# ------------------------------- host wrapper ---------------------------------
def _prep_params(params):
    """Head-stack the weights, fold 1/sqrt(d_head) into W_Q/b_Q, cast bf16."""
    scale = 1.0 / (D_HEAD ** 0.5)

    def per_head_w(w):            # (D_HIDN, D_PROJ) -> (N_HEAD, D_HIDN, D_HEAD)
        return jnp.transpose(w.reshape(D_HIDN, N_HEAD, D_HEAD), (1, 0, 2))

    def per_head_b(b):            # (1, D_PROJ) -> (N_HEAD, 1, D_HEAD)
        return jnp.transpose(b.reshape(1, N_HEAD, D_HEAD), (1, 0, 2))

    wq = per_head_w(params["wq"] * scale).astype(jnp.bfloat16)
    wk = per_head_w(params["wk"]).astype(jnp.bfloat16)
    wv = per_head_w(params["wv"]).astype(jnp.bfloat16)
    bq = per_head_b(params["bq"] * scale).astype(jnp.float32)
    bk = per_head_b(params["bk"]).astype(jnp.float32)
    bv = per_head_b(params["bv"]).astype(jnp.float32)
    wo = params["wo"].reshape(N_HEAD, D_HEAD, D_HIDN).astype(jnp.bfloat16)
    bo = params["bo"].astype(jnp.float32)                      # (1, D_HIDN)
    return wq, bq, wk, bk, wv, bv, wo, bo


@functools.partial(jax.jit, static_argnames=("return_prob", "fused", "prob_dtype"))
def _mha_impl(Q, K, V, key_mask, params, *, return_prob, fused, prob_dtype):
    B, S, D = Q.shape
    assert D == D_HIDN
    BB = _pick_batch_block(B, S)
    nblk = B // BB
    wq, bq, wk, bk, wv, bv, wo, bo = _prep_params(params)

    # Compact key-padding bias: (B, 1, S) f32, broadcast over queries in-kernel.
    bias = key_mask.astype(jnp.float32).reshape(B, 1, S) * MASK_NEG

    def rows(x):      # flatten batch into the matmul M dim, halve DMA bytes (bf16)
        return x.reshape(B * S, D_HIDN).astype(jnp.bfloat16)

    x_spec = pl.BlockSpec((BB * S, D_HIDN), lambda b, h: (b, 0))
    whead = lambda shape: pl.BlockSpec(shape, lambda b, h: (h, 0, 0))

    in_specs = ([x_spec] if fused else [x_spec, x_spec, x_spec]) + [
        pl.BlockSpec((BB, 1, S), lambda b, h: (b, 0, 0)),      # key-padding bias
        whead((1, D_HIDN, D_HEAD)), whead((1, 1, D_HEAD)),     # W_Q_h, b_Q_h
        whead((1, D_HIDN, D_HEAD)), whead((1, 1, D_HEAD)),     # W_K_h, b_K_h
        whead((1, D_HIDN, D_HEAD)), whead((1, 1, D_HEAD)),     # W_V_h, b_V_h
        whead((1, D_HEAD, D_HIDN)),                            # W_out_h
        pl.BlockSpec((1, D_HIDN), lambda b, h: (0, 0)),        # b_out
    ]
    inputs = ([rows(Q)] if fused else [rows(Q), rows(K), rows(V)]) + [
        bias, wq, bq, wk, bk, wv, bv, wo, bo]

    out_shapes = [jax.ShapeDtypeStruct((B * S, D_HIDN), jnp.float32)]
    out_specs = [pl.BlockSpec((BB * S, D_HIDN), lambda b, h: (b, 0))]
    if return_prob:
        out_shapes.append(jax.ShapeDtypeStruct((B, N_HEAD, S, S), prob_dtype))
        out_specs.append(pl.BlockSpec((BB, 1, S, S), lambda b, h: (b, h, 0, 0)))

    kernel = _make_kernel(BB, S, return_prob, fused)

    # TODO(synk): for large S, additionally tile the query dim and stream K/V
    # with an online softmax (grid (B//BB, N_HEAD, S//Tq, S//Tk)) to respect
    # v7x's 64 MiB VMEM; the monolithic softmax here assumes S^2 blocks fit.
    res = pl.pallas_call(
        kernel,
        out_shape=tuple(out_shapes),
        grid_spec=pltpu.PrefetchScalarGridSpec(
            num_scalar_prefetch=0,
            grid=(nblk, N_HEAD),                 # head = innermost reduction axis
            in_specs=in_specs,
            out_specs=tuple(out_specs)),
        compiler_params=pltpu.CompilerParams(
            dimension_semantics=("parallel", "arbitrary"),
            vmem_limit_bytes=_vmem_limit_bytes()),
    )(*inputs)

    if return_prob:
        out2d, prob = res
        return out2d.reshape(B, S, D_HIDN), prob
    (out2d,) = res
    return out2d.reshape(B, S, D_HIDN)


def multi_head_attention(Q, K, V, attn_mask, params, return_prob=True,
                         prob_dtype=jnp.float32):
    """Q,K,V: (B,S,D) f32; attn_mask: (B,S,S) bool (True = masked) or (B,S) key mask.

    The module's attn_mask is a key-padding mask expanded over the query dim
    (inputs.eq(0).unsqueeze(1).expand(B,S,S)); only the key axis carries
    information, so the kernel is fed a compact (B,1,S) additive bias.
    Returns (output, attn_prob) like the PyTorch module, or just `output` when
    return_prob=False (skips the attn_prob HBM writeback).
    prob_dtype=jnp.bfloat16 halves the attn_prob writeback traffic."""
    # TODO(synk): arbitrary per-query (non key-padding) masks would need the
    # full (B,S,S) bias path; the spec module never produces one.
    if attn_mask.ndim == 3:
        key_mask = attn_mask[:, 0, :]
    else:
        key_mask = attn_mask.reshape(attn_mask.shape[0], -1)
    fused = (Q is K) and (K is V)
    if fused:
        return _mha_impl(Q, Q, Q, key_mask, params, return_prob=return_prob,
                         fused=True, prob_dtype=prob_dtype)
    return _mha_impl(Q, K, V, key_mask, params, return_prob=return_prob,
                     fused=False, prob_dtype=prob_dtype)


# ------------------------- parameter initialization ---------------------------
def init_params(key):
    """nn.Linear-style init: U(-1/sqrt(fan_in), 1/sqrt(fan_in)); weights stored
    pre-transposed (fan_in, fan_out) so y = x @ W + b matches torch."""
    ks = jax.random.split(key, 8)

    def lin(kw, kb, fan_in, fan_out):
        bound = 1.0 / (fan_in ** 0.5)
        w = jax.random.uniform(kw, (fan_in, fan_out), jnp.float32, -bound, bound)
        b = jax.random.uniform(kb, (1, fan_out), jnp.float32, -bound, bound)
        return w, b

    wq, bq = lin(ks[0], ks[1], D_HIDN, D_PROJ)
    wk, bk = lin(ks[2], ks[3], D_HIDN, D_PROJ)
    wv, bv = lin(ks[4], ks[5], D_HIDN, D_PROJ)
    wo, bo = lin(ks[6], ks[7], D_PROJ, D_HIDN)
    return dict(wq=wq, bq=bq, wk=wk, bk=bk, wv=wv, bv=bv, wo=wo, bo=bo)


# ------------------------------ pure-JAX reference ----------------------------
def reference_mha(Q, K, V, attn_mask, p):
    B, S, _ = Q.shape
    q = (Q @ p["wq"] + p["bq"][0]).reshape(B, S, N_HEAD, D_HEAD).transpose(0, 2, 1, 3)
    k = (K @ p["wk"] + p["bk"][0]).reshape(B, S, N_HEAD, D_HEAD).transpose(0, 2, 1, 3)
    v = (V @ p["wv"] + p["bv"][0]).reshape(B, S, N_HEAD, D_HEAD).transpose(0, 2, 1, 3)
    scores = jnp.einsum("bhqd,bhkd->bhqk", q, k) / (D_HEAD ** 0.5)
    scores = jnp.where(attn_mask[:, None, :, :], MASK_NEG, scores)
    prob = jax.nn.softmax(scores, axis=-1)
    ctx = jnp.einsum("bhqk,bhkd->bhqd", prob, v)
    ctx = ctx.transpose(0, 2, 1, 3).reshape(B, S, N_HEAD * D_HEAD)
    out = ctx @ p["wo"] + p["bo"][0]
    return out, prob


# ------------------------------------ main ------------------------------------
if __name__ == "__main__":
    B, S = 2, 8
    key = jax.random.PRNGKey(0)
    k_inp, k_param, k_ids, k_q, k_k, k_v = jax.random.split(key, 6)

    # Synthetic "input_sums" (embedding + positional) -> Q = K = V.
    x = jax.random.normal(k_inp, (B, S, D_HIDN), dtype=jnp.float32)

    # Synthetic token ids with some padding (id == 0), matching
    # inputs.eq(0).unsqueeze(1).expand(B, S, S).
    ids = jax.random.randint(k_ids, (B, S), 0, 50)
    ids = ids.at[:, -2:].set(0)
    attn_mask = (ids == 0)[:, None, :].repeat(S, axis=1)    # (B, S, S) bool

    params = init_params(k_param)

    # bf16 matmuls vs f32 reference -> loose tolerances.
    RTOL, ATOL = 2e-2, 2e-2

    # 1) Self-attention (Q == K == V).
    out, prob = multi_head_attention(x, x, x, attn_mask, params)
    jax.block_until_ready((out, prob))
    ref_out, ref_prob = reference_mha(x, x, x, attn_mask, params)
    assert jnp.allclose(out, ref_out, rtol=RTOL, atol=ATOL), "output mismatch (fused)"
    assert jnp.allclose(prob, ref_prob, rtol=RTOL, atol=ATOL), "attn_prob mismatch (fused)"

    # 2) Output-only fast path (skips attn_prob writeback).
    out_only = multi_head_attention(x, x, x, attn_mask, params, return_prob=False)
    jax.block_until_ready(out_only)
    assert jnp.allclose(out_only, ref_out, rtol=RTOL, atol=ATOL), "output mismatch (no-prob)"

    # 3) Distinct Q / K / V: general kernel path.
    q_in = jax.random.normal(k_q, (B, S, D_HIDN), dtype=jnp.float32)
    k_in = jax.random.normal(k_k, (B, S, D_HIDN), dtype=jnp.float32)
    v_in = jax.random.normal(k_v, (B, S, D_HIDN), dtype=jnp.float32)
    out_g, prob_g = multi_head_attention(q_in, k_in, v_in, attn_mask, params)
    jax.block_until_ready((out_g, prob_g))
    ref_out_g, ref_prob_g = reference_mha(q_in, k_in, v_in, attn_mask, params)
    assert jnp.allclose(out_g, ref_out_g, rtol=RTOL, atol=ATOL), "output mismatch (general)"
    assert jnp.allclose(prob_g, ref_prob_g, rtol=RTOL, atol=ATOL), "attn_prob mismatch (general)"

    print("KERNEL_OK")
</pallas_src>

<mosaic_0001>
module attributes {stable_mosaic.version = 11 : i64} {
  func.func @kernel(%arg0: i32, %arg1: i32, %arg2: memref<16x256xbf16, #tpu.memory_space<vmem>>, %arg3: memref<2x1x8xf32, #tpu.memory_space<vmem>>, %arg4: memref<1x256x64xbf16, #tpu.memory_space<vmem>>, %arg5: memref<1x1x64xf32, #tpu.memory_space<vmem>>, %arg6: memref<1x256x64xbf16, #tpu.memory_space<vmem>>, %arg7: memref<1x1x64xf32, #tpu.memory_space<vmem>>, %arg8: memref<1x256x64xbf16, #tpu.memory_space<vmem>>, %arg9: memref<1x1x64xf32, #tpu.memory_space<vmem>>, %arg10: memref<1x64x256xbf16, #tpu.memory_space<vmem>>, %arg11: memref<1x256xf32, #tpu.memory_space<vmem>>, %arg12: memref<16x256xf32, #tpu.memory_space<vmem>>, %arg13: memref<2x1x8x8xf32, #tpu.memory_space<vmem>>) attributes {dimension_semantics = [#tpu.dimension_semantics<parallel>, #tpu.dimension_semantics<arbitrary>], iteration_bounds = array<i64: 1, 4>, scalar_prefetch = 0 : i64, scratch_operands = 0 : i64, tpu.core_type = #tpu.core_type<tc>, window_params = [{transform_indices = @transform_0, window_bounds = array<i64: 16, 256>}, {transform_indices = @transform_1, window_bounds = array<i64: 2, 1, 8>}, {transform_indices = @transform_2, window_bounds = array<i64: 1, 256, 64>}, {transform_indices = @transform_3, window_bounds = array<i64: 1, 1, 64>}, {transform_indices = @transform_4, window_bounds = array<i64: 1, 256, 64>}, {transform_indices = @transform_5, window_bounds = array<i64: 1, 1, 64>}, {transform_indices = @transform_6, window_bounds = array<i64: 1, 256, 64>}, {transform_indices = @transform_7, window_bounds = array<i64: 1, 1, 64>}, {transform_indices = @transform_8, window_bounds = array<i64: 1, 64, 256>}, {pipeline_mode = #tpu.pipeline_mode<synchronous>, transform_indices = @transform_9, window_bounds = array<i64: 1, 256>}, {transform_indices = @transform_10, window_bounds = array<i64: 16, 256>}, {transform_indices = @transform_11, window_bounds = array<i64: 2, 1, 8, 8>}]} {
    %c0 = arith.constant 0 : index
    %c0_0 = arith.constant 0 : index
    %0 = vector.load %arg2[%c0, %c0_0] : memref<16x256xbf16, #tpu.memory_space<vmem>>, vector<16x256xbf16>
    %c0_1 = arith.constant 0 : index
    %c0_2 = arith.constant 0 : index
    %c0_3 = arith.constant 0 : index
    %1 = vector.load %arg4[%c0_1, %c0_2, %c0_3] : memref<1x256x64xbf16, #tpu.memory_space<vmem>>, vector<1x256x64xbf16>
    %2 = vector.shape_cast %1 : vector<1x256x64xbf16> to vector<256x64xbf16>
    %cst = arith.constant dense<0.000000e+00> : vector<16x64xf32>
    %3 = tpu.matmul %0, %2, %cst {dimension_numbers = #tpu.dot_dimension_numbers<[1], [0], [0], [1], [0, 0, 1, 1], [], []>} : vector<16x256xbf16>, vector<256x64xbf16>, vector<16x64xf32> -> vector<16x64xf32>
    %c0_4 = arith.constant 0 : index
    %c0_5 = arith.constant 0 : index
    %c0_6 = arith.constant 0 : index
    %4 = vector.load %arg5[%c0_4, %c0_5, %c0_6] : memref<1x1x64xf32, #tpu.memory_space<vmem>>, vector<1x1x64xf32>
    %5 = vector.shape_cast %4 : vector<1x1x64xf32> to vector<1x64xf32>
    %6 = vector.broadcast %5 : vector<1x64xf32> to vector<16x64xf32>
    %7 = arith.addf %3, %6 : vector<16x64xf32>
    %8 = vector.shape_cast %7 : vector<16x64xf32> to vector<2x8x64xf32>
    %9 = arith.truncf %8 : vector<2x8x64xf32> to vector<2x8x64xbf16>
    %c0_7 = arith.constant 0 : index
    %c0_8 = arith.constant 0 : index
    %c0_9 = arith.constant 0 : index
    %10 = vector.load %arg6[%c0_7, %c0_8, %c0_9] : memref<1x256x64xbf16, #tpu.memory_space<vmem>>, vector<1x256x64xbf16>
    %11 = vector.shape_cast %10 : vector<1x256x64xbf16> to vector<256x64xbf16>
    %cst_10 = arith.constant dense<0.000000e+00> : vector<16x64xf32>
    %12 = tpu.matmul %0, %11, %cst_10 {dimension_numbers = #tpu.dot_dimension_numbers<[1], [0], [0], [1], [0, 0, 1, 1], [], []>} : vector<16x256xbf16>, vector<256x64xbf16>, vector<16x64xf32> -> vector<16x64xf32>
    %c0_11 = arith.constant 0 : index
    %c0_12 = arith.constant 0 : index
    %c0_13 = arith.constant 0 : index
    %13 = vector.load %arg7[%c0_11, %c0_12, %c0_13] : memref<1x1x64xf32, #tpu.memory_space<vmem>>, vector<1x1x64xf32>
    %14 = vector.shape_cast %13 : vector<1x1x64xf32> to vector<1x64xf32>
    %15 = vector.broadcast %14 : vector<1x64xf32> to vector<16x64xf32>
    %16 = arith.addf %12, %15 : vector<16x64xf32>
    %17 = vector.shape_cast %16 : vector<16x64xf32> to vector<2x8x64xf32>
    %18 = arith.truncf %17 : vector<2x8x64xf32> to vector<2x8x64xbf16>
    %c0_14 = arith.constant 0 : index
    %c0_15 = arith.constant 0 : index
    %c0_16 = arith.constant 0 : index
    %19 = vector.load %arg8[%c0_14, %c0_15, %c0_16] : memref<1x256x64xbf16, #tpu.memory_space<vmem>>, vector<1x256x64xbf16>
    %20 = vector.shape_cast %19 : vector<1x256x64xbf16> to vector<256x64xbf16>
    %cst_17 = arith.constant dense<0.000000e+00> : vector<16x64xf32>
    %21 = tpu.matmul %0, %20, %cst_17 {dimension_numbers = #tpu.dot_dimension_numbers<[1], [0], [0], [1], [0, 0, 1, 1], [], []>} : vector<16x256xbf16>, vector<256x64xbf16>, vector<16x64xf32> -> vector<16x64xf32>
    %c0_18 = arith.constant 0 : index
    %c0_19 = arith.constant 0 : index
    %c0_20 = arith.constant 0 : index
    %22 = vector.load %arg9[%c0_18, %c0_19, %c0_20] : memref<1x1x64xf32, #tpu.memory_space<vmem>>, vector<1x1x64xf32>
    %23 = vector.shape_cast %22 : vector<1x1x64xf32> to vector<1x64xf32>
    %24 = vector.broadcast %23 : vector<1x64xf32> to vector<16x64xf32>
    %25 = arith.addf %21, %24 : vector<16x64xf32>
    %26 = vector.shape_cast %25 : vector<16x64xf32> to vector<2x8x64xf32>
    %27 = arith.truncf %26 : vector<2x8x64xf32> to vector<2x8x64xbf16>
    "tpu.trace_start"() <{level = 10 : i32, message = "bqd,bkd->bqk"}> : () -> ()
    %cst_21 = arith.constant dense<0.000000e+00> : vector<2x8x8xf32>
    %28 = tpu.matmul %9, %18, %cst_21 {dimension_numbers = #tpu.dot_dimension_numbers<[2], [2], [1], [1], [0, 0, 0, 1, 1, 1], [0], [0]>} : vector<2x8x64xbf16>, vector<2x8x64xbf16>, vector<2x8x8xf32> -> vector<2x8x8xf32>
    "tpu.trace_stop"() : () -> ()
    %c0_22 = arith.constant 0 : index
    %c0_23 = arith.constant 0 : index
    %c0_24 = arith.constant 0 : index
    %29 = vector.load %arg3[%c0_22, %c0_23, %c0_24] : memref<2x1x8xf32, #tpu.memory_space<vmem>>, vector<2x1x8xf32>
    %30 = vector.broadcast %29 : vector<2x1x8xf32> to vector<2x8x8xf32>
    %31 = arith.addf %28, %30 : vector<2x8x8xf32>
    %cst_25 = arith.constant dense<0xFF800000> : vector<2x8xf32>
    %32 = vector.multi_reduction <maximumf>, %31, %cst_25 [2] : vector<2x8x8xf32> to vector<2x8xf32>
    %33 = vector.shape_cast %32 : vector<2x8xf32> to vector<2x8x1xf32>
    %34 = vector.broadcast %33 : vector<2x8x1xf32> to vector<2x8x8xf32>
    %35 = arith.subf %31, %34 : vector<2x8x8xf32>
    %36 = math.exp %35 : vector<2x8x8xf32>
    %cst_26 = arith.constant dense<0.000000e+00> : vector<2x8xf32>
    %37 = vector.multi_reduction <add>, %36, %cst_26 [2] : vector<2x8x8xf32> to vector<2x8xf32>
    %38 = vector.shape_cast %37 : vector<2x8xf32> to vector<2x8x1xf32>
    %39 = tpu.reciprocal %38 {approx = true} : vector<2x8x1xf32> -> vector<2x8x1xf32>
    %40 = vector.broadcast %39 : vector<2x8x1xf32> to vector<2x8x8xf32>
    %41 = arith.mulf %36, %40 : vector<2x8x8xf32>
    %42 = vector.shape_cast %41 : vector<2x8x8xf32> to vector<2x1x8x8xf32>
    %c0_27 = arith.constant 0 : index
    %c0_28 = arith.constant 0 : index
    %c0_29 = arith.constant 0 : index
    %c0_30 = arith.constant 0 : index
    %43 = vector.load %arg13[%c0_27, %c0_28, %c0_29, %c0_30] : memref<2x1x8x8xf32, #tpu.memory_space<vmem>>, vector<2x1x8x8xf32>
    tpu.vector_store %arg13[%c0_27, %c0_28, %c0_29, %c0_30], %42 {strides = array<i32>} : memref<2x1x8x8xf32, #tpu.memory_space<vmem>>, vector<2x1x8x8xf32>,
    %44 = arith.truncf %41 : vector<2x8x8xf32> to vector<2x8x8xbf16>
    "tpu.trace_start"() <{level = 10 : i32, message = "bqk,bkd->bqd"}> : () -> ()
    %cst_31 = arith.constant dense<0.000000e+00> : vector<2x8x64xf32>
    %45 = tpu.matmul %44, %27, %cst_31 {dimension_numbers = #tpu.dot_dimension_numbers<[2], [1], [1], [2], [0, 0, 0, 1, 1, 2], [0], [0]>} : vector<2x8x8xbf16>, vector<2x8x64xbf16>, vector<2x8x64xf32> -> vector<2x8x64xf32>
    "tpu.trace_stop"() : () -> ()
    %46 = vector.shape_cast %45 : vector<2x8x64xf32> to vector<16x64xf32>
    %47 = arith.truncf %46 : vector<16x64xf32> to vector<16x64xbf16>
    %c0_32 = arith.constant 0 : index
    %c0_33 = arith.constant 0 : index
    %c0_34 = arith.constant 0 : index
    %48 = vector.load %arg10[%c0_32, %c0_33, %c0_34] : memref<1x64x256xbf16, #tpu.memory_space<vmem>>, vector<1x64x256xbf16>
    %49 = vector.shape_cast %48 : vector<1x64x256xbf16> to vector<64x256xbf16>
    %cst_35 = arith.constant dense<0.000000e+00> : vector<16x256xf32>
    %50 = tpu.matmul %47, %49, %cst_35 {dimension_numbers = #tpu.dot_dimension_numbers<[1], [0], [0], [1], [0, 0, 1, 1], [], []>} : vector<16x64xbf16>, vector<64x256xbf16>, vector<16x256xf32> -> vector<16x256xf32>
    %c0_i32 = arith.constant 0 : i32
    %51 = arith.cmpi eq, %arg1, %c0_i32 : i32
    %52 = arith.extui %51 : i1 to i32
    %c0_i32_36 = arith.constant 0 : i32
    %53 = arith.cmpi ne, %52, %c0_i32_36 : i32
    scf.if %53 {
      %c0_39 = arith.constant 0 : index
      %c0_40 = arith.constant 0 : index
      %57 = vector.load %arg11[%c0_39, %c0_40] : memref<1x256xf32, #tpu.memory_space<vmem>>, vector<1x256xf32>
      %58 = vector.broadcast %57 : vector<1x256xf32> to vector<16x256xf32>
      %59 = arith.addf %50, %58 : vector<16x256xf32>
      %c0_41 = arith.constant 0 : index
      %c0_42 = arith.constant 0 : index
      %60 = vector.load %arg12[%c0_41, %c0_42] : memref<16x256xf32, #tpu.memory_space<vmem>>, vector<16x256xf32>
      tpu.vector_store %arg12[%c0_41, %c0_42], %59 {strides = array<i32>} : memref<16x256xf32, #tpu.memory_space<vmem>>, vector<16x256xf32>,
    } else {
    }
    %c0_i32_37 = arith.constant 0 : i32
    %54 = arith.cmpi ne, %arg1, %c0_i32_37 : i32
    %55 = arith.extui %54 : i1 to i32
    %c0_i32_38 = arith.constant 0 : i32
    %56 = arith.cmpi ne, %55, %c0_i32_38 : i32
    scf.if %56 {
      %c0_39 = arith.constant 0 : index
      %c0_40 = arith.constant 0 : index
      %57 = vector.load %arg12[%c0_39, %c0_40] : memref<16x256xf32, #tpu.memory_space<vmem>>, vector<16x256xf32>
      %58 = arith.addf %57, %50 : vector<16x256xf32>
      %c0_41 = arith.constant 0 : index
      %c0_42 = arith.constant 0 : index
      %59 = vector.load %arg12[%c0_41, %c0_42] : memref<16x256xf32, #tpu.memory_space<vmem>>, vector<16x256xf32>
      tpu.vector_store %arg12[%c0_41, %c0_42], %58 {strides = array<i32>} : memref<16x256xf32, #tpu.memory_space<vmem>>, vector<16x256xf32>,
    } else {
    }
    return
  }
  func.func @transform_0(%arg0: i32, %arg1: i32) -> (i32, i32) {
    %c0_i32 = arith.constant 0 : i32
    %c0_i32_0 = arith.constant 0 : i32
    return %arg0, %c0_i32 : i32, i32
  }
  func.func @transform_1(%arg0: i32, %arg1: i32) -> (i32, i32, i32) {
    %c0_i32 = arith.constant 0 : i32
    %c0_i32_0 = arith.constant 0 : i32
    %c0_i32_1 = arith.constant 0 : i32
    return %arg0, %c0_i32, %c0_i32_0 : i32, i32, i32
  }
  func.func @transform_2(%arg0: i32, %arg1: i32) -> (i32, i32, i32) {
    %c0_i32 = arith.constant 0 : i32
    %c0_i32_0 = arith.constant 0 : i32
    %c0_i32_1 = arith.constant 0 : i32
    return %arg1, %c0_i32, %c0_i32_0 : i32, i32, i32
  }
  func.func @transform_3(%arg0: i32, %arg1: i32) -> (i32, i32, i32) {
    %c0_i32 = arith.constant 0 : i32
    %c0_i32_0 = arith.constant 0 : i32
    %c0_i32_1 = arith.constant 0 : i32
    return %arg1, %c0_i32, %c0_i32_0 : i32, i32, i32
  }
  func.func @transform_4(%arg0: i32, %arg1: i32) -> (i32, i32, i32) {
    %c0_i32 = arith.constant 0 : i32
    %c0_i32_0 = arith.constant 0 : i32
    %c0_i32_1 = arith.constant 0 : i32
    return %arg1, %c0_i32, %c0_i32_0 : i32, i32, i32
  }
  func.func @transform_5(%arg0: i32, %arg1: i32) -> (i32, i32, i32) {
    %c0_i32 = arith.constant 0 : i32
    %c0_i32_0 = arith.constant 0 : i32
    %c0_i32_1 = arith.constant 0 : i32
    return %arg1, %c0_i32, %c0_i32_0 : i32, i32, i32
  }
  func.func @transform_6(%arg0: i32, %arg1: i32) -> (i32, i32, i32) {
    %c0_i32 = arith.constant 0 : i32
    %c0_i32_0 = arith.constant 0 : i32
    %c0_i32_1 = arith.constant 0 : i32
    return %arg1, %c0_i32, %c0_i32_0 : i32, i32, i32
  }
  func.func @transform_7(%arg0: i32, %arg1: i32) -> (i32, i32, i32) {
    %c0_i32 = arith.constant 0 : i32
    %c0_i32_0 = arith.constant 0 : i32
    %c0_i32_1 = arith.constant 0 : i32
    return %arg1, %c0_i32, %c0_i32_0 : i32, i32, i32
  }
  func.func @transform_8(%arg0: i32, %arg1: i32) -> (i32, i32, i32) {
    %c0_i32 = arith.constant 0 : i32
    %c0_i32_0 = arith.constant 0 : i32
    %c0_i32_1 = arith.constant 0 : i32
    return %arg1, %c0_i32, %c0_i32_0 : i32, i32, i32
  }
  func.func @transform_9(%arg0: i32, %arg1: i32) -> (i32, i32) {
    %c0_i32 = arith.constant 0 : i32
    %c0_i32_0 = arith.constant 0 : i32
    %c0_i32_1 = arith.constant 0 : i32
    return %c0_i32, %c0_i32_0 : i32, i32
  }
  func.func @transform_10(%arg0: i32, %arg1: i32) -> (i32, i32) {
    %c0_i32 = arith.constant 0 : i32
    %c0_i32_0 = arith.constant 0 : i32
    return %arg0, %c0_i32 : i32, i32
  }
  func.func @transform_11(%arg0: i32, %arg1: i32) -> (i32, i32, i32, i32) {
    %c0_i32 = arith.constant 0 : i32
    %c0_i32_0 = arith.constant 0 : i32
    %c0_i32_1 = arith.constant 0 : i32
    return %arg0, %arg1, %c0_i32, %c0_i32_0 : i32, i32, i32, i32
  }
}

</mosaic_0001>

<llo_original>
// kernel: _mha_impl.1
$region0: #{_mha_impl.1}
  #allocation0 [shape = 'u32[]', space=smem, size = 0x4, offset = 0x4, fixed_abs, tag = 'smem constant byte address 0x4 - core index']
  #allocation1 [shape = 'u32[72,128]{1,0:T(1,128)}', space=vmem, size = 0x9000, scoped, tag = 'internal scratch']
  %s0 = inlined_call_operand.vmem [shape: bf16[16,256], index: 0, kind: input, shape index: {}]
  %s1 = inlined_call_operand.vmem [shape: f32[2,1,8], index: 1, kind: input, shape index: {}]
  %s2 = inlined_call_operand.vmem [shape: bf16[4,256,64], index: 2, kind: input, shape index: {}]
  %s3 = inlined_call_operand.vmem [shape: f32[4,1,64], index: 3, kind: input, shape index: {}]
  %s4 = inlined_call_operand.vmem [shape: bf16[4,256,64], index: 4, kind: input, shape index: {}]
  %s5 = inlined_call_operand.vmem [shape: f32[4,1,64], index: 5, kind: input, shape index: {}]
  %s6 = inlined_call_operand.vmem [shape: bf16[4,256,64], index: 6, kind: input, shape index: {}]
  %s7 = inlined_call_operand.vmem [shape: f32[4,1,64], index: 7, kind: input, shape index: {}]
  %s8 = inlined_call_operand.vmem [shape: bf16[4,64,256], index: 8, kind: input, shape index: {}]
  %s9 = inlined_call_operand.vmem [shape: f32[1,256], index: 9, kind: input, shape index: {}]
  %s10 = inlined_call_operand.hbm [shape: f32[16,256], index: 10, kind: output, shape index: {0}]
  %s11 = inlined_call_operand.hbm [shape: f32[2,4,8,8], index: 11, kind: output, shape index: {1}]
  %12 = xla_tuple %s10, %s11
  %s13 = sld [smem:[#allocation0]]
  $region89: #{_mha_impl.1} parent=0
    _
  %s15 = ssub.s32 1, %s13
  %s16 = scalar_select 0, %s15, %s13
  $region1: #{_mha_impl.1} parent=0
    #allocation2 [shape = 'u8[16384]{0}', space=vmem, size = 0x4000, scoped, tag = 'output window, operand 0, single buffered']
    #allocation3 [shape = 's32[2]{0}', space=sflag, size = 0x8, scoped, tag = 'scoped memory for _mha_impl.1']
    #allocation4 [shape = 'u8[16384]{0}', space=vmem, size = 0x4000, scoped, tag = 'output window, operand 1']
    #allocation5 [shape = 's32[2]{0}', space=sflag, size = 0x8, scoped, tag = 'scoped memory for _mha_impl.1']
    %17 = vsyncpa [#allocation3], 0
    %18 = vsyncpa [#allocation5], 0
    %s19 = scalar_lea.sflag [#allocation5], 1
    %20 = vsyncpa %s19, 0
    loop: start=0, step=1, limit=6
    $region2: #{_mha_impl.1} parent=1 // loop_pre_header
      _
    $region3: #{_mha_impl.1} parent=1 // loop_header
      %s22 = sphi 0, %s26
      %p23 = scmp.ge.s32.totalorder %s22, 6
      %s29 = sphi 0, %s41
      %s30 = sphi 0, %s37
      %s31 = sphi 0, %s29
      %s32 = sphi 0, %s30
      %s33 = sphi 0, %s31
      %s34 = sphi 0, %s32
      %s44 = sphi 0, %s46
      %s47 = sphi 0, %s44
      %s48 = sphi 0, %s47
      %s64 = sphi 0, %s48
      %s70 = sphi 0, %s72
      %s73 = sphi 0, %s70
      %s74 = sphi 0, %s73
      %s90 = sphi 0, %s74
      %s96 = sphi 0, %s98
      %s99 = sphi 0, %s96
      %s100 = sphi 0, %s99
      %s116 = sphi 0, %s100
      %s122 = sphi 0, %s124
      %s125 = sphi 0, %s122
      %s126 = sphi 0, %s125
      %s142 = sphi 0, %s126
      %s148 = sphi 0, %s150
      %s151 = sphi 0, %s148
      %s152 = sphi 0, %s151
      %s168 = sphi 0, %s152
      %s174 = sphi 0, %s176
      %s177 = sphi 0, %s174
      %s178 = sphi 0, %s177
      %s194 = sphi 0, %s178
      %s200 = sphi 0, %s202
      %s203 = sphi 0, %s200
      %s204 = sphi 0, %s203
      %s220 = sphi 0, %s204
      %s226 = sphi 0, %s228
      %s229 = sphi 0, %s226
      %s230 = sphi 0, %s229
      %s246 = sphi 0, %s230
      %s252 = sphi 0, %s254
      %s255 = sphi 0, %s252
      %s256 = sphi 0, %s255
      %s272 = sphi 0, %s256
      %s276 = sphi 0, %s276
      %s278 = sphi 0, %s276
      %s279 = sphi 0, %s278
      %s293 = sphi 0, %s279
      %s299 = sphi 0, %s301
      %s302 = sphi 0, %s299
      %s303 = sphi 0, %s302
      %s319 = sphi 0, %s303
      %s327 = sphi 0, %s329
      %s330 = sphi 0, %s327
      %s331 = sphi 0, %s330
      %s347 = sphi 0, %s331
    $region4: #{_mha_impl.1} parent=1 // loop_header_branch
      %25 = sbr.rel (%p23) target = $region8
    $region5: #{_mha_impl.1} parent=1 // loop_body
      %s27 = ssub.s32 %s22, 1
      %s28 = ssub.s32 %s22, 2
      %s35 = sadd.s32 1, %s30
      %p36 = scmp.ge.s32.totalorder %s35, 4
      %s37 = scalar_select %p36, 0, %s35
      %s38 = sadd.s32 1, %s29
      %s39 = scalar_select %p36, %s38, %s29
      %p40 = scmp.ge.s32.totalorder %s39, 1
      %s41 = scalar_select %p40, 0, %s39
      %s42 = ssub.s32 %s29, %s41
      %p43 = scmp.eq.s32.totalorder %s42, 0
      %s45 = sadd.s32 %s44, 1
      %s46 = scalar_select %p43, %s44, %s45
      %p49 = pneg %p43
      %p50 = scmp.eq.s32.totalorder %s22, 3
      %p51 = por %p49, %p50
      %p52 = scmp.ne.s32.totalorder %s44, %s47
      %p53 = scmp.eq.s32.totalorder %s22, 0
      %p54 = por %p52, %p53
      %p55 = scmp.ne.s32.totalorder %s44, %s47
      %p56 = scmp.eq.s32.totalorder %s27, 3
      %p57 = por %p55, %p56
      %p58 = scmp.ne.s32.totalorder %s47, %s48
      %p59 = scmp.eq.s32.totalorder %s27, 0
      %p60 = por %p58, %p59
      %p61 = scmp.ne.s32.totalorder %s47, %s48
      %p62 = scmp.eq.s32.totalorder %s28, 3
      %p63 = por %p61, %p62
      %p65 = scmp.ne.s32.totalorder %s48, %s64
      %p66 = scmp.eq.s32.totalorder %s28, 0
      %p67 = por %p65, %p66
      %s68 = ssub.s32 %s29, %s41
      %p69 = scmp.eq.s32.totalorder %s68, 0
      %s71 = sadd.s32 %s70, 1
      %s72 = scalar_select %p69, %s70, %s71
      %p75 = pneg %p69
      %p76 = scmp.eq.s32.totalorder %s22, 3
      %p77 = por %p75, %p76
      %p78 = scmp.ne.s32.totalorder %s70, %s73
      %p79 = scmp.eq.s32.totalorder %s22, 0
      %p80 = por %p78, %p79
      %p81 = scmp.ne.s32.totalorder %s70, %s73
      %p82 = scmp.eq.s32.totalorder %s27, 3
      %p83 = por %p81, %p82
      %p84 = scmp.ne.s32.totalorder %s73, %s74
      %p85 = scmp.eq.s32.totalorder %s27, 0
      %p86 = por %p84, %p85
      %p87 = scmp.ne.s32.totalorder %s73, %s74
      %p88 = scmp.eq.s32.totalorder %s28, 3
      %p89 = por %p87, %p88
      %p91 = scmp.ne.s32.totalorder %s74, %s90
      %p92 = scmp.eq.s32.totalorder %s28, 0
      %p93 = por %p91, %p92
      %s94 = ssub.s32 %s30, %s37
      %p95 = scmp.eq.s32.totalorder %s94, 0
      %s97 = sadd.s32 %s96, 1
      %s98 = scalar_select %p95, %s96, %s97
      %p101 = pneg %p95
      %p102 = scmp.eq.s32.totalorder %s22, 3
      %p103 = por %p101, %p102
      %p104 = scmp.ne.s32.totalorder %s96, %s99
      %p105 = scmp.eq.s32.totalorder %s22, 0
      %p106 = por %p104, %p105
      %p107 = scmp.ne.s32.totalorder %s96, %s99
      %p108 = scmp.eq.s32.totalorder %s27, 3
      %p109 = por %p107, %p108
      %p110 = scmp.ne.s32.totalorder %s99, %s100
      %p111 = scmp.eq.s32.totalorder %s27, 0
      %p112 = por %p110, %p111
      %p113 = scmp.ne.s32.totalorder %s99, %s100
      %p114 = scmp.eq.s32.totalorder %s28, 3
      %p115 = por %p113, %p114
      %p117 = scmp.ne.s32.totalorder %s100, %s116
      %p118 = scmp.eq.s32.totalorder %s28, 0
      %p119 = por %p117, %p118
      %s120 = ssub.s32 %s30, %s37
      %p121 = scmp.eq.s32.totalorder %s120, 0
      %s123 = sadd.s32 %s122, 1
      %s124 = scalar_select %p121, %s122, %s123
      %p127 = pneg %p121
      %p128 = scmp.eq.s32.totalorder %s22, 3
      %p129 = por %p127, %p128
      %p130 = scmp.ne.s32.totalorder %s122, %s125
      %p131 = scmp.eq.s32.totalorder %s22, 0
      %p132 = por %p130, %p131
      %p133 = scmp.ne.s32.totalorder %s122, %s125
      %p134 = scmp.eq.s32.totalorder %s27, 3
      %p135 = por %p133, %p134
      %p136 = scmp.ne.s32.totalorder %s125, %s126
      %p137 = scmp.eq.s32.totalorder %s27, 0
      %p138 = por %p136, %p137
      %p139 = scmp.ne.s32.totalorder %s125, %s126
      %p140 = scmp.eq.s32.totalorder %s28, 3
      %p141 = por %p139, %p140
      %p143 = scmp.ne.s32.totalorder %s126, %s142
      %p144 = scmp.eq.s32.totalorder %s28, 0
      %p145 = por %p143, %p144
      %s146 = ssub.s32 %s30, %s37
      %p147 = scmp.eq.s32.totalorder %s146, 0
      %s149 = sadd.s32 %s148, 1
      %s150 = scalar_select %p147, %s148, %s149
      %p153 = pneg %p147
      %p154 = scmp.eq.s32.totalorder %s22, 3
      %p155 = por %p153, %p154
      %p156 = scmp.ne.s32.totalorder %s148, %s151
      %p157 = scmp.eq.s32.totalorder %s22, 0
      %p158 = por %p156, %p157
      %p159 = scmp.ne.s32.totalorder %s148, %s151
      %p160 = scmp.eq.s32.totalorder %s27, 3
      %p161 = por %p159, %p160
      %p162 = scmp.ne.s32.totalorder %s151, %s152
      %p163 = scmp.eq.s32.totalorder %s27, 0
      %p164 = por %p162, %p163
      %p165 = scmp.ne.s32.totalorder %s151, %s152
      %p166 = scmp.eq.s32.totalorder %s28, 3
      %p167 = por %p165, %p166
      %p169 = scmp.ne.s32.totalorder %s152, %s168
      %p170 = scmp.eq.s32.totalorder %s28, 0
      %p171 = por %p169, %p170
      %s172 = ssub.s32 %s30, %s37
      %p173 = scmp.eq.s32.totalorder %s172, 0
      %s175 = sadd.s32 %s174, 1
      %s176 = scalar_select %p173, %s174, %s175
      %p179 = pneg %p173
      %p180 = scmp.eq.s32.totalorder %s22, 3
      %p181 = por %p179, %p180
      %p182 = scmp.ne.s32.totalorder %s174, %s177
      %p183 = scmp.eq.s32.totalorder %s22, 0
      %p184 = por %p182, %p183
      %p185 = scmp.ne.s32.totalorder %s174, %s177
      %p186 = scmp.eq.s32.totalorder %s27, 3
      %p187 = por %p185, %p186
      %p188 = scmp.ne.s32.totalorder %s177, %s178
      %p189 = scmp.eq.s32.totalorder %s27, 0
      %p190 = por %p188, %p189
      %p191 = scmp.ne.s32.totalorder %s177, %s178
      %p192 = scmp.eq.s32.totalorder %s28, 3
      %p193 = por %p191, %p192
      %p195 = scmp.ne.s32.totalorder %s178, %s194
      %p196 = scmp.eq.s32.totalorder %s28, 0
      %p197 = por %p195, %p196
      %s198 = ssub.s32 %s30, %s37
      %p199 = scmp.eq.s32.totalorder %s198, 0
      %s201 = sadd.s32 %s200, 1
      %s202 = scalar_select %p199, %s200, %s201
      %p205 = pneg %p199
      %p206 = scmp.eq.s32.totalorder %s22, 3
      %p207 = por %p205, %p206
      %p208 = scmp.ne.s32.totalorder %s200, %s203
      %p209 = scmp.eq.s32.totalorder %s22, 0
      %p210 = por %p208, %p209
      %p211 = scmp.ne.s32.totalorder %s200, %s203
      %p212 = scmp.eq.s32.totalorder %s27, 3
      %p213 = por %p211, %p212
      %p214 = scmp.ne.s32.totalorder %s203, %s204
      %p215 = scmp.eq.s32.totalorder %s27, 0
      %p216 = por %p214, %p215
      %p217 = scmp.ne.s32.totalorder %s203, %s204
      %p218 = scmp.eq.s32.totalorder %s28, 3
      %p219 = por %p217, %p218
      %p221 = scmp.ne.s32.totalorder %s204, %s220
      %p222 = scmp.eq.s32.totalorder %s28, 0
      %p223 = por %p221, %p222
      %s224 = ssub.s32 %s30, %s37
      %p225 = scmp.eq.s32.totalorder %s224, 0
      %s227 = sadd.s32 %s226, 1
      %s228 = scalar_select %p225, %s226, %s227
      %p231 = pneg %p225
      %p232 = scmp.eq.s32.totalorder %s22, 3
      %p233 = por %p231, %p232
      %p234 = scmp.ne.s32.totalorder %s226, %s229
      %p235 = scmp.eq.s32.totalorder %s22, 0
      %p236 = por %p234, %p235
      %p237 = scmp.ne.s32.totalorder %s226, %s229
      %p238 = scmp.eq.s32.totalorder %s27, 3
      %p239 = por %p237, %p238
      %p240 = scmp.ne.s32.totalorder %s229, %s230
      %p241 = scmp.eq.s32.totalorder %s27, 0
      %p242 = por %p240, %p241
      %p243 = scmp.ne.s32.totalorder %s229, %s230
      %p244 = scmp.eq.s32.totalorder %s28, 3
      %p245 = por %p243, %p244
      %p247 = scmp.ne.s32.totalorder %s230, %s246
      %p248 = scmp.eq.s32.totalorder %s28, 0
      %p249 = por %p247, %p248
      %s250 = ssub.s32 %s30, %s37
      %p251 = scmp.eq.s32.totalorder %s250, 0
      %s253 = sadd.s32 %s252, 1
      %s254 = scalar_select %p251, %s252, %s253
      %p257 = pneg %p251
      %p258 = scmp.eq.s32.totalorder %s22, 3
      %p259 = por %p257, %p258
      %p260 = scmp.ne.s32.totalorder %s252, %s255
      %p261 = scmp.eq.s32.totalorder %s22, 0
      %p262 = por %p260, %p261
      %p263 = scmp.ne.s32.totalorder %s252, %s255
      %p264 = scmp.eq.s32.totalorder %s27, 3
      %p265 = por %p263, %p264
      %p266 = scmp.ne.s32.totalorder %s255, %s256
      %p267 = scmp.eq.s32.totalorder %s27, 0
      %p268 = por %p266, %p267
      %p269 = scmp.ne.s32.totalorder %s255, %s256
      %p270 = scmp.eq.s32.totalorder %s28, 3
      %p271 = por %p269, %p270
      %p273 = scmp.ne.s32.totalorder %s256, %s272
      %p274 = scmp.eq.s32.totalorder %s28, 0
      %p275 = por %p273, %p274
      %s277 = sadd.s32 %s276, 1
      %p280 = scmp.eq.s32.totalorder %s22, 3
      %p281 = scmp.ne.s32.totalorder %s276, %s278
      %p282 = scmp.eq.s32.totalorder %s22, 0
      %p283 = por %p281, %p282
      %p284 = scmp.ne.s32.totalorder %s276, %s278
      %p285 = scmp.eq.s32.totalorder %s27, 3
      %p286 = por %p284, %p285
      %p287 = scmp.ne.s32.totalorder %s278, %s279
      %p288 = scmp.eq.s32.totalorder %s27, 0
      %p289 = por %p287, %p288
      %p290 = scmp.ne.s32.totalorder %s278, %s279
      %p291 = scmp.eq.s32.totalorder %s28, 3
      %p292 = por %p290, %p291
      %p294 = scmp.ne.s32.totalorder %s279, %s293
      %p295 = scmp.eq.s32.totalorder %s28, 0
      %p296 = por %p294, %p295
      %s297 = ssub.s32 %s29, %s41
      %p298 = scmp.eq.s32.totalorder %s297, 0
      %s300 = sadd.s32 %s299, 1
      %s301 = scalar_select %p298, %s299, %s300
      %p304 = pneg %p298
      %p305 = scmp.eq.s32.totalorder %s22, 3
      %p306 = por %p304, %p305
      %p307 = scmp.ne.s32.totalorder %s299, %s302
      %p308 = scmp.eq.s32.totalorder %s22, 0
      %p309 = por %p307, %p308
      %p310 = scmp.ne.s32.totalorder %s299, %s302
      %p311 = scmp.eq.s32.totalorder %s27, 3
      %p312 = por %p310, %p311
      %p313 = scmp.ne.s32.totalorder %s302, %s303
      %p314 = scmp.eq.s32.totalorder %s27, 0
      %p315 = por %p313, %p314
      %p316 = scmp.ne.s32.totalorder %s302, %s303
      %p317 = scmp.eq.s32.totalorder %s28, 3
      %p318 = por %p316, %p317
      %p320 = scmp.ne.s32.totalorder %s303, %s319
      %p321 = scmp.eq.s32.totalorder %s28, 0
      %p322 = por %p320, %p321
      %s323 = ssub.s32 %s29, %s41
      %s324 = ssub.s32 %s30, %s37
      %s325 = sor.u32 %s323, %s324
      %p326 = scmp.eq.s32.totalorder %s325, 0
      %s328 = sadd.s32 %s327, 1
      %s329 = scalar_select %p326, %s327, %s328
      %p332 = pneg %p326
      %p333 = scmp.eq.s32.totalorder %s22, 3
      %p334 = por %p332, %p333
      %p335 = scmp.ne.s32.totalorder %s327, %s330
      %p336 = scmp.eq.s32.totalorder %s22, 0
      %p337 = por %p335, %p336
      %p338 = scmp.ne.s32.totalorder %s327, %s330
      %p339 = scmp.eq.s32.totalorder %s27, 3
      %p340 = por %p338, %p339
      %p341 = scmp.ne.s32.totalorder %s330, %s331
      %p342 = scmp.eq.s32.totalorder %s27, 0
      %p343 = por %p341, %p342
      %p344 = scmp.ne.s32.totalorder %s330, %s331
      %p345 = scmp.eq.s32.totalorder %s28, 3
      %p346 = por %p344, %p345
      %p348 = scmp.ne.s32.totalorder %s331, %s347
      %p349 = scmp.eq.s32.totalorder %s28, 0
      %p350 = por %p348, %p349
      %p351 = scmp.le.s32.totalorder 1, %s22
      %p352 = scmp.lt.s32.totalorder %s22, 5
      %p353 = pnand %p351, %p352
      %p354 = pneg %p353
      // Predicated region
      $region9: #{_mha_impl.1} parent=5 // pred_check
        _
      $region10: #{_mha_impl.1} parent=5 // pred_check_branch
        %356 = sbr.rel (%p353) target = $region12
      $region11: #{_mha_impl.1} parent=5 // pred_region
        %s357 = ssub.s32 %s22, 1
        // Predicated region
        $region13: #{_mha_impl.1} parent=11 // pred_check
          %p358 = pneg %p60
        $region14: #{_mha_impl.1} parent=11 // pred_check_branch
          %360 = sbr.rel (%p358) target = $region16
        $region15: #{_mha_impl.1} parent=11 // pred_region
          %s361 = smul.u32 2, %s31
          %p362 = scmp.lt.s32.totalorder %s361, 1
          %s363 = scalar_select %p362, %s361, 1
          %s364 = smul.addr %s363, 2
          %s365 = smul.addr %s364, 4
          %s366 = scalar_lea.vmem %s0, %s365
          %s367 = smul.u32 2, %s31
        $region16: #{_mha_impl.1} parent=11 // pred_fallthru
          _
        // Predicated region
        $region17: #{_mha_impl.1} parent=11 // pred_check
          %p368 = pneg %p86
        $region18: #{_mha_impl.1} parent=11 // pred_check_branch
          %370 = sbr.rel (%p368) target = $region20
        $region19: #{_mha_impl.1} parent=11 // pred_region
          %s371 = smul.u32 2, %s31
          %p372 = scmp.lt.s32.totalorder %s371, 1
          %s373 = scalar_select %p372, %s371, 1
          %s374 = scalar_lea.vmem %s1, %s373
          %s375 = smul.u32 2, %s31
        $region20: #{_mha_impl.1} parent=11 // pred_fallthru
          _
        // Predicated region
        $region21: #{_mha_impl.1} parent=11 // pred_check
          %p376 = pneg %p289
        $region22: #{_mha_impl.1} parent=11 // pred_check_branch
          %378 = sbr.rel (%p376) target = $region24
        $region23: #{_mha_impl.1} parent=11 // pred_region
          _
        $region24: #{_mha_impl.1} parent=11 // pred_fallthru
          _
      $region12: #{_mha_impl.1} parent=5 // pred_fallthru
        _
      %p379 = scmp.lt.s32.totalorder %s22, 4
      // Predicated region
      $region25: #{_mha_impl.1} parent=5 // pred_check
        %p380 = pneg %p379
      $region26: #{_mha_impl.1} parent=5 // pred_check_branch
        %382 = sbr.rel (%p380) target = $region28
      $region27: #{_mha_impl.1} parent=5 // pred_region
        // Predicated region
        $region29: #{_mha_impl.1} parent=27 // pred_check
          %p383 = pneg %p106
        $region30: #{_mha_impl.1} parent=27 // pred_check_branch
          %385 = sbr.rel (%p383) target = $region32
        $region31: #{_mha_impl.1} parent=27 // pred_region
          %p386 = scmp.lt.s32.totalorder %s30, 3
          %s387 = scalar_select %p386, %s30, 3
          %s388 = smul.addr %s387, 32
          %s389 = smul.addr %s388, 4
          %s390 = scalar_lea.vmem %s2, %s389
        $region32: #{_mha_impl.1} parent=27 // pred_fallthru
          _
        // Predicated region
        $region33: #{_mha_impl.1} parent=27 // pred_check
          %p391 = pneg %p132
        $region34: #{_mha_impl.1} parent=27 // pred_check_branch
          %393 = sbr.rel (%p391) target = $region36
        $region35: #{_mha_impl.1} parent=27 // pred_region
          %p394 = scmp.lt.s32.totalorder %s30, 3
          %s395 = scalar_select %p394, %s30, 3
          %s396 = scalar_lea.vmem %s3, %s395
        $region36: #{_mha_impl.1} parent=27 // pred_fallthru
          _
        // Predicated region
        $region37: #{_mha_impl.1} parent=27 // pred_check
          %p397 = pneg %p158
        $region38: #{_mha_impl.1} parent=27 // pred_check_branch
          %399 = sbr.rel (%p397) target = $region40
        $region39: #{_mha_impl.1} parent=27 // pred_region
          %p400 = scmp.lt.s32.totalorder %s30, 3
          %s401 = scalar_select %p400, %s30, 3
          %s402 = smul.addr %s401, 32
          %s403 = smul.addr %s402, 4
          %s404 = scalar_lea.vmem %s4, %s403
        $region40: #{_mha_impl.1} parent=27 // pred_fallthru
          _
        // Predicated region
        $region41: #{_mha_impl.1} parent=27 // pred_check
          %p405 = pneg %p184
        $region42: #{_mha_impl.1} parent=27 // pred_check_branch
          %407 = sbr.rel (%p405) target = $region44
        $region43: #{_mha_impl.1} parent=27 // pred_region
          %p408 = scmp.lt.s32.totalorder %s30, 3
          %s409 = scalar_select %p408, %s30, 3
          %s410 = scalar_lea.vmem %s5, %s409
        $region44: #{_mha_impl.1} parent=27 // pred_fallthru
          _
        // Predicated region
        $region45: #{_mha_impl.1} parent=27 // pred_check
          %p411 = pneg %p210
        $region46: #{_mha_impl.1} parent=27 // pred_check_branch
          %413 = sbr.rel (%p411) target = $region48
        $region47: #{_mha_impl.1} parent=27 // pred_region
          %p414 = scmp.lt.s32.totalorder %s30, 3
          %s415 = scalar_select %p414, %s30, 3
          %s416 = smul.addr %s415, 32
          %s417 = smul.addr %s416, 4
          %s418 = scalar_lea.vmem %s6, %s417
        $region48: #{_mha_impl.1} parent=27 // pred_fallthru
          _
        // Predicated region
        $region49: #{_mha_impl.1} parent=27 // pred_check
          %p419 = pneg %p236
        $region50: #{_mha_impl.1} parent=27 // pred_check_branch
          %421 = sbr.rel (%p419) target = $region52
        $region51: #{_mha_impl.1} parent=27 // pred_region
          %p422 = scmp.lt.s32.totalorder %s30, 3
          %s423 = scalar_select %p422, %s30, 3
          %s424 = scalar_lea.vmem %s7, %s423
        $region52: #{_mha_impl.1} parent=27 // pred_fallthru
          _
        // Predicated region
        $region53: #{_mha_impl.1} parent=27 // pred_check
          %p425 = pneg %p262
        $region54: #{_mha_impl.1} parent=27 // pred_check_branch
          %427 = sbr.rel (%p425) target = $region56
        $region55: #{_mha_impl.1} parent=27 // pred_region
          %p428 = scmp.lt.s32.totalorder %s30, 3
          %s429 = scalar_select %p428, %s30, 3
          %s430 = smul.addr %s429, 16
          %s431 = smul.addr %s430, 4
          %s432 = scalar_lea.vmem %s8, %s431
        $region56: #{_mha_impl.1} parent=27 // pred_fallthru
          _
      $region28: #{_mha_impl.1} parent=5 // pred_fallthru
        _
      %p433 = scmp.le.s32.totalorder 1, %s22
      %p434 = scmp.lt.s32.totalorder %s22, 5
      %p435 = pnand %p433, %p434
      %p436 = pneg %p435
      // Predicated region
      $region57: #{_mha_impl.1} parent=5 // pred_check
        _
      $region58: #{_mha_impl.1} parent=5 // pred_check_branch
        %438 = sbr.rel (%p435) target = $region60
      $region59: #{_mha_impl.1} parent=5 // pred_region
        %s439 = ssub.s32 %s22, 1
        %s440 = smul.u32 2, %s31
        %p441 = scmp.lt.s32.totalorder %s440, 1
        %s442 = scalar_select %p441, %s440, 1
        %s443 = smul.addr %s442, 2
        %s444 = smul.addr %s443, 4
        %s445 = scalar_lea.vmem %s0, %s444
        %p446 = pneg %p60
        %p447 = pneg %p57
        %s448 = smul.u32 2, %s31
        %p449 = scmp.lt.s32.totalorder %s448, 1
        %s450 = scalar_select %p449, %s448, 1
        %s451 = scalar_lea.vmem %s1, %s450
        %p452 = pneg %p86
        %p453 = pneg %p83
        %p454 = scmp.lt.s32.totalorder %s32, 3
        %s455 = scalar_select %p454, %s32, 3
        %s456 = smul.addr %s455, 32
        %s457 = smul.addr %s456, 4
        %s458 = scalar_lea.vmem %s2, %s457
        %p459 = pneg %p112
        %p460 = pneg %p109
        %p461 = scmp.lt.s32.totalorder %s32, 3
        %s462 = scalar_select %p461, %s32, 3
        %s463 = scalar_lea.vmem %s3, %s462
        %p464 = pneg %p138
        %p465 = pneg %p135
        %p466 = scmp.lt.s32.totalorder %s32, 3
        %s467 = scalar_select %p466, %s32, 3
        %s468 = smul.addr %s467, 32
        %s469 = smul.addr %s468, 4
        %s470 = scalar_lea.vmem %s4, %s469
        %p471 = pneg %p164
        %p472 = pneg %p161
        %p473 = scmp.lt.s32.totalorder %s32, 3
        %s474 = scalar_select %p473, %s32, 3
        %s475 = scalar_lea.vmem %s5, %s474
        %p476 = pneg %p190
        %p477 = pneg %p187
        %p478 = scmp.lt.s32.totalorder %s32, 3
        %s479 = scalar_select %p478, %s32, 3
        %s480 = smul.addr %s479, 32
        %s481 = smul.addr %s480, 4
        %s482 = scalar_lea.vmem %s6, %s481
        %p483 = pneg %p216
        %p484 = pneg %p213
        %p485 = scmp.lt.s32.totalorder %s32, 3
        %s486 = scalar_select %p485, %s32, 3
        %s487 = scalar_lea.vmem %s7, %s486
        %p488 = pneg %p242
        %p489 = pneg %p239
        %p490 = scmp.lt.s32.totalorder %s32, 3
        %s491 = scalar_select %p490, %s32, 3
        %s492 = smul.addr %s491, 16
        %s493 = smul.addr %s492, 4
        %s494 = scalar_lea.vmem %s8, %s493
        %p495 = pneg %p268
        %p496 = pneg %p265
        %p497 = pneg %p289
        %p498 = pneg %p286
        %p499 = pneg %p315
        %p500 = pneg %p312
        %p501 = pneg %p343
        %p502 = pneg %p340
        %s503 = sand.u32 %s330, 1
        %s504 = scalar_lea.sflag [#allocation5], %s503
        %s505 = sand.u32 %s330, 1
        %s506 = smul.addr %s505, 16
        %s507 = scalar_lea.vmem [#allocation4], %s506
        %s508 = smul.u32 2, %s31
        %p509 = scmp.lt.s32.totalorder %s508, 1
        %s510 = scalar_select %p509, %s508, 1
        %s511 = smul.addr %s510, 2
        %s512 = smul.addr %s511, 4
        %s513 = scalar_lea.vmem %s0, %s512
        %s514 = smul.u32 2, %s31
        %s515 = smul.u32 2, %s31
        %p516 = scmp.lt.s32.totalorder %s515, 1
        %s517 = scalar_select %p516, %s515, 1
        %s518 = scalar_lea.vmem %s1, %s517
        %s519 = smul.u32 2, %s31
        %p520 = scmp.lt.s32.totalorder %s32, 3
        %s521 = scalar_select %p520, %s32, 3
        %s522 = smul.addr %s521, 32
        %s523 = smul.addr %s522, 4
        %s524 = scalar_lea.vmem %s2, %s523
        %p525 = scmp.lt.s32.totalorder %s32, 3
        %s526 = scalar_select %p525, %s32, 3
        %s527 = scalar_lea.vmem %s3, %s526
        %p528 = scmp.lt.s32.totalorder %s32, 3
        %s529 = scalar_select %p528, %s32, 3
        %s530 = smul.addr %s529, 32
        %s531 = smul.addr %s530, 4
        %s532 = scalar_lea.vmem %s4, %s531
        %p533 = scmp.lt.s32.totalorder %s32, 3
        %s534 = scalar_select %p533, %s32, 3
        %s535 = scalar_lea.vmem %s5, %s534
        %p536 = scmp.lt.s32.totalorder %s32, 3
        %s537 = scalar_select %p536, %s32, 3
        %s538 = smul.addr %s537, 32
        %s539 = smul.addr %s538, 4
        %s540 = scalar_lea.vmem %s6, %s539
        %p541 = scmp.lt.s32.totalorder %s32, 3
        %s542 = scalar_select %p541, %s32, 3
        %s543 = scalar_lea.vmem %s7, %s542
        %p544 = scmp.lt.s32.totalorder %s32, 3
        %s545 = scalar_select %p544, %s32, 3
        %s546 = smul.addr %s545, 16
        %s547 = smul.addr %s546, 4
        %s548 = scalar_lea.vmem %s8, %s547
        %s549 = smul.u32 2, %s31
        %s550 = smul.u32 2, %s31
        %v552 = vld [vmem:[%s513] sm:$0xff]
        %v553 = vld [vmem:[%s513 + $0x8] sm:$0xff]
        %v554 = vld [vmem:[%s524] sm:$0xf]
        %v555 = vld [vmem:[%s524 + $0x4] sm:$0xf]
        %v556 = vld [vmem:[%s524 + $0x8] sm:$0xf]
        %v557 = vld [vmem:[%s524 + $0xc] sm:$0xf]
        %v558 = vld [vmem:[%s524 + $0x10] sm:$0xf]
        %v559 = vld [vmem:[%s524 + $0x14] sm:$0xf]
        %v560 = vld [vmem:[%s524 + $0x18] sm:$0xf]
        %v561 = vld [vmem:[%s524 + $0x1c] sm:$0xf]
        %v562 = vld [vmem:[%s524 + $0x20] sm:$0xf]
        %v563 = vld [vmem:[%s524 + $0x24] sm:$0xf]
        %v564 = vld [vmem:[%s524 + $0x28] sm:$0xf]
        %v565 = vld [vmem:[%s524 + $0x2c] sm:$0xf]
        %v566 = vld [vmem:[%s524 + $0x30] sm:$0xf]
        %v567 = vld [vmem:[%s524 + $0x34] sm:$0xf]
        %v568 = vld [vmem:[%s524 + $0x38] sm:$0xf]
        %v569 = vld [vmem:[%s524 + $0x3c] sm:$0xf]
        %v570 = vld [vmem:[%s524 + $0x40] sm:$0xf]
        %v571 = vld [vmem:[%s524 + $0x44] sm:$0xf]
        %v572 = vld [vmem:[%s524 + $0x48] sm:$0xf]
        %v573 = vld [vmem:[%s524 + $0x4c] sm:$0xf]
        %v574 = vld [vmem:[%s524 + $0x50] sm:$0xf]
        %v575 = vld [vmem:[%s524 + $0x54] sm:$0xf]
        %v576 = vld [vmem:[%s524 + $0x58] sm:$0xf]
        %v577 = vld [vmem:[%s524 + $0x5c] sm:$0xf]
        %v578 = vld [vmem:[%s524 + $0x60] sm:$0xf]
        %v579 = vld [vmem:[%s524 + $0x64] sm:$0xf]
        %v580 = vld [vmem:[%s524 + $0x68] sm:$0xf]
        %v581 = vld [vmem:[%s524 + $0x6c] sm:$0xf]
        %v582 = vld [vmem:[%s524 + $0x70] sm:$0xf]
        %v583 = vld [vmem:[%s524 + $0x74] sm:$0xf]
        %v584 = vld [vmem:[%s524 + $0x78] sm:$0xf]
        %v585 = vld [vmem:[%s524 + $0x7c] sm:$0xf]
        %v586 = vld [vmem:[%s527] sm:$0x1]
        %v588 = vperm.slane %v586, 0
        %v592 = vunpack.c.l.b16 %v552
        %v593 = vunpack.c.h.b16 %v552
        %v594 = vunpack.c.l.b16 %v553
        %v595 = vunpack.c.h.b16 %v553
        %v596 = vpack.c.b16 %v594, %v592
        %v597 = vpack.c.b16 %v595, %v593
        %v632 = vunpack.c.l.b16 %v554
        %v633 = vunpack.c.l.b16 %v555
        %v634 = vunpack.c.l.b16 %v556
        %v635 = vunpack.c.l.b16 %v557
        %v636 = vunpack.c.l.b16 %v558
        %v637 = vunpack.c.l.b16 %v559
        %v638 = vunpack.c.l.b16 %v560
        %v639 = vunpack.c.l.b16 %v561
        %v640 = vunpack.c.l.b16 %v562
        %v641 = vunpack.c.l.b16 %v563
        %v642 = vunpack.c.l.b16 %v564
        %v643 = vunpack.c.l.b16 %v565
        %v644 = vunpack.c.l.b16 %v566
        %v645 = vunpack.c.l.b16 %v567
        %v646 = vunpack.c.l.b16 %v568
        %v647 = vunpack.c.l.b16 %v569
        %v648 = vunpack.c.l.b16 %v570
        %v649 = vunpack.c.l.b16 %v571
        %v650 = vunpack.c.l.b16 %v572
        %v651 = vunpack.c.l.b16 %v573
        %v652 = vunpack.c.l.b16 %v574
        %v653 = vunpack.c.l.b16 %v575
        %v654 = vunpack.c.l.b16 %v576
        %v655 = vunpack.c.l.b16 %v577
        %v656 = vunpack.c.l.b16 %v578
        %v657 = vunpack.c.l.b16 %v579
        %v658 = vunpack.c.l.b16 %v580
        %v659 = vunpack.c.l.b16 %v581
        %v660 = vunpack.c.l.b16 %v582
        %v661 = vunpack.c.l.b16 %v583
        %v662 = vunpack.c.l.b16 %v584
        %v663 = vunpack.c.l.b16 %v585
        %v664 = vpack.c.b16 %v633, %v632
        %v665 = vpack.c.b16 %v635, %v634
        %v666 = vpack.c.b16 %v637, %v636
        %v667 = vpack.c.b16 %v639, %v638
        %v668 = vpack.c.b16 %v641, %v640
        %v669 = vpack.c.b16 %v643, %v642
        %v670 = vpack.c.b16 %v645, %v644
        %v671 = vpack.c.b16 %v647, %v646
        %v672 = vpack.c.b16 %v649, %v648
        %v673 = vpack.c.b16 %v651, %v650
        %v674 = vpack.c.b16 %v653, %v652
        %v675 = vpack.c.b16 %v655, %v654
        %v676 = vpack.c.b16 %v657, %v656
        %v677 = vpack.c.b16 %v659, %v658
        %v678 = vpack.c.b16 %v661, %v660
        %v679 = vpack.c.b16 %v663, %v662
        %696 = vmatpush.bf16.msra.mxu0 %v671
        %697 = vmatpush.bf16.msra.mxu0 %v670
        %698 = vmatpush.bf16.msra.mxu0 %v669
        %699 = vmatpush.bf16.msra.mxu0 %v668
        %700 = vmatpush.bf16.msra.mxu0 %v667
        %701 = vmatpush.bf16.msra.mxu0 %v666
        %702 = vmatpush.bf16.msra.mxu0 %v665
        %703 = vmatpush.bf16.msra.mxu0 %v664
        %704 = vmatmul.bf16.gmra.mxu0 %v596
        %v705 = vpop.f32.mrf.mxu0
        %v706 = vadd.f32 %v588, %v705
        %v707 = vpop.f32.mrf.mxu0
        %v708 = vadd.f32 %v588, %v707
        %709 = vdwg.mxu0
        %710 = vmatpush.bf16.msra.mxu0 %v679
        %711 = vmatpush.bf16.msra.mxu0 %v678
        %712 = vmatpush.bf16.msra.mxu0 %v677
        %713 = vmatpush.bf16.msra.mxu0 %v676
        %714 = vmatpush.bf16.msra.mxu0 %v675
        %715 = vmatpush.bf16.msra.mxu0 %v674
        %716 = vmatpush.bf16.msra.mxu0 %v673
        %717 = vmatpush.bf16.msra.mxu0 %v672
        %718 = vmatmul.bf16.gmra.mxu0 %v597
        %v719 = vpop.f32.mrf.mxu0
        %v720 = vadd.f32 %v706, %v719
        %v721 = vpop.f32.mrf.mxu0
        %v722 = vadd.f32 %v708, %v721
        %723 = vdwg.mxu0
        %v724 = vpack.c.bf16 %v720, %v720
        %v725 = vpack.c.bf16 %v722, %v722
        %v726 = vld [vmem:[%s532] sm:$0xf]
        %v727 = vld [vmem:[%s532 + $0x4] sm:$0xf]
        %v728 = vld [vmem:[%s532 + $0x8] sm:$0xf]
        %v729 = vld [vmem:[%s532 + $0xc] sm:$0xf]
        %v730 = vld [vmem:[%s532 + $0x10] sm:$0xf]
        %v731 = vld [vmem:[%s532 + $0x14] sm:$0xf]
        %v732 = vld [vmem:[%s532 + $0x18] sm:$0xf]
        %v733 = vld [vmem:[%s532 + $0x1c] sm:$0xf]
        %v734 = vld [vmem:[%s532 + $0x20] sm:$0xf]
        %v735 = vld [vmem:[%s532 + $0x24] sm:$0xf]
        %v736 = vld [vmem:[%s532 + $0x28] sm:$0xf]
        %v737 = vld [vmem:[%s532 + $0x2c] sm:$0xf]
        %v738 = vld [vmem:[%s532 + $0x30] sm:$0xf]
        %v739 = vld [vmem:[%s532 + $0x34] sm:$0xf]
        %v740 = vld [vmem:[%s532 + $0x38] sm:$0xf]
        %v741 = vld [vmem:[%s532 + $0x3c] sm:$0xf]
        %v742 = vld [vmem:[%s532 + $0x40] sm:$0xf]
        %v743 = vld [vmem:[%s532 + $0x44] sm:$0xf]
        %v744 = vld [vmem:[%s532 + $0x48] sm:$0xf]
        %v745 = vld [vmem:[%s532 + $0x4c] sm:$0xf]
        %v746 = vld [vmem:[%s532 + $0x50] sm:$0xf]
        %v747 = vld [vmem:[%s532 + $0x54] sm:$0xf]
        %v748 = vld [vmem:[%s532 + $0x58] sm:$0xf]
        %v749 = vld [vmem:[%s532 + $0x5c] sm:$0xf]
        %v750 = vld [vmem:[%s532 + $0x60] sm:$0xf]
        %v751 = vld [vmem:[%s532 + $0x64] sm:$0xf]
        %v752 = vld [vmem:[%s532 + $0x68] sm:$0xf]
        %v753 = vld [vmem:[%s532 + $0x6c] sm:$0xf]
        %v754 = vld [vmem:[%s532 + $0x70] sm:$0xf]
        %v755 = vld [vmem:[%s532 + $0x74] sm:$0xf]
        %v756 = vld [vmem:[%s532 + $0x78] sm:$0xf]
        %v757 = vld [vmem:[%s532 + $0x7c] sm:$0xf]
        %v758 = vld [vmem:[%s535] sm:$0x1]
        %v760 = vperm.slane %v758, 0
        %v794 = vunpack.c.l.b16 %v726
        %v795 = vunpack.c.l.b16 %v727
        %v796 = vunpack.c.l.b16 %v728
        %v797 = vunpack.c.l.b16 %v729
        %v798 = vunpack.c.l.b16 %v730
        %v799 = vunpack.c.l.b16 %v731
        %v800 = vunpack.c.l.b16 %v732
        %v801 = vunpack.c.l.b16 %v733
        %v802 = vunpack.c.l.b16 %v734
        %v803 = vunpack.c.l.b16 %v735
        %v804 = vunpack.c.l.b16 %v736
        %v805 = vunpack.c.l.b16 %v737
        %v806 = vunpack.c.l.b16 %v738
        %v807 = vunpack.c.l.b16 %v739
        %v808 = vunpack.c.l.b16 %v740
        %v809 = vunpack.c.l.b16 %v741
        %v810 = vunpack.c.l.b16 %v742
        %v811 = vunpack.c.l.b16 %v743
        %v812 = vunpack.c.l.b16 %v744
        %v813 = vunpack.c.l.b16 %v745
        %v814 = vunpack.c.l.b16 %v746
        %v815 = vunpack.c.l.b16 %v747
        %v816 = vunpack.c.l.b16 %v748
        %v817 = vunpack.c.l.b16 %v749
        %v818 = vunpack.c.l.b16 %v750
        %v819 = vunpack.c.l.b16 %v751
        %v820 = vunpack.c.l.b16 %v752
        %v821 = vunpack.c.l.b16 %v753
        %v822 = vunpack.c.l.b16 %v754
        %v823 = vunpack.c.l.b16 %v755
        %v824 = vunpack.c.l.b16 %v756
        %v825 = vunpack.c.l.b16 %v757
        %v826 = vpack.c.b16 %v795, %v794
        %v827 = vpack.c.b16 %v797, %v796
        %v828 = vpack.c.b16 %v799, %v798
        %v829 = vpack.c.b16 %v801, %v800
        %v830 = vpack.c.b16 %v803, %v802
        %v831 = vpack.c.b16 %v805, %v804
        %v832 = vpack.c.b16 %v807, %v806
        %v833 = vpack.c.b16 %v809, %v808
        %v834 = vpack.c.b16 %v811, %v810
        %v835 = vpack.c.b16 %v813, %v812
        %v836 = vpack.c.b16 %v815, %v814
        %v837 = vpack.c.b16 %v817, %v816
        %v838 = vpack.c.b16 %v819, %v818
        %v839 = vpack.c.b16 %v821, %v820
        %v840 = vpack.c.b16 %v823, %v822
        %v841 = vpack.c.b16 %v825, %v824
        %858 = vmatpush.bf16.msra.mxu0 %v833
        %859 = vmatpush.bf16.msra.mxu0 %v832
        %860 = vmatpush.bf16.msra.mxu0 %v831
        %861 = vmatpush.bf16.msra.mxu0 %v830
        %862 = vmatpush.bf16.msra.mxu0 %v829
        %863 = vmatpush.bf16.msra.mxu0 %v828
        %864 = vmatpush.bf16.msra.mxu0 %v827
        %865 = vmatpush.bf16.msra.mxu0 %v826
        %866 = vmatmul.bf16.gmra.mxu0 %v596
        %v867 = vpop.f32.mrf.mxu0
        %v868 = vadd.f32 %v760, %v867
        %v869 = vpop.f32.mrf.mxu0
        %v870 = vadd.f32 %v760, %v869
        %871 = vdwg.mxu0
        %872 = vmatpush.bf16.msra.mxu0 %v841
        %873 = vmatpush.bf16.msra.mxu0 %v840
        %874 = vmatpush.bf16.msra.mxu0 %v839
        %875 = vmatpush.bf16.msra.mxu0 %v838
        %876 = vmatpush.bf16.msra.mxu0 %v837
        %877 = vmatpush.bf16.msra.mxu0 %v836
        %878 = vmatpush.bf16.msra.mxu0 %v835
        %879 = vmatpush.bf16.msra.mxu0 %v834
        %880 = vmatmul.bf16.gmra.mxu0 %v597
        %v881 = vpop.f32.mrf.mxu0
        %v882 = vadd.f32 %v868, %v881
        %v883 = vpop.f32.mrf.mxu0
        %v884 = vadd.f32 %v870, %v883
        %885 = vdwg.mxu0
        %v886 = vpack.c.bf16 %v882, %v882
        %v887 = vpack.c.bf16 %v884, %v884
        %v888 = vld [vmem:[%s540] sm:$0xf]
        %v889 = vld [vmem:[%s540 + $0x4] sm:$0xf]
        %v890 = vld [vmem:[%s540 + $0x8] sm:$0xf]
        %v891 = vld [vmem:[%s540 + $0xc] sm:$0xf]
        %v892 = vld [vmem:[%s540 + $0x10] sm:$0xf]
        %v893 = vld [vmem:[%s540 + $0x14] sm:$0xf]
        %v894 = vld [vmem:[%s540 + $0x18] sm:$0xf]
        %v895 = vld [vmem:[%s540 + $0x1c] sm:$0xf]
        %v896 = vld [vmem:[%s540 + $0x20] sm:$0xf]
        %v897 = vld [vmem:[%s540 + $0x24] sm:$0xf]
        %v898 = vld [vmem:[%s540 + $0x28] sm:$0xf]
        %v899 = vld [vmem:[%s540 + $0x2c] sm:$0xf]
        %v900 = vld [vmem:[%s540 + $0x30] sm:$0xf]
        %v901 = vld [vmem:[%s540 + $0x34] sm:$0xf]
        %v902 = vld [vmem:[%s540 + $0x38] sm:$0xf]
        %v903 = vld [vmem:[%s540 + $0x3c] sm:$0xf]
        %v904 = vld [vmem:[%s540 + $0x40] sm:$0xf]
        %v905 = vld [vmem:[%s540 + $0x44] sm:$0xf]
        %v906 = vld [vmem:[%s540 + $0x48] sm:$0xf]
        %v907 = vld [vmem:[%s540 + $0x4c] sm:$0xf]
        %v908 = vld [vmem:[%s540 + $0x50] sm:$0xf]
        %v909 = vld [vmem:[%s540 + $0x54] sm:$0xf]
        %v910 = vld [vmem:[%s540 + $0x58] sm:$0xf]
        %v911 = vld [vmem:[%s540 + $0x5c] sm:$0xf]
        %v912 = vld [vmem:[%s540 + $0x60] sm:$0xf]
        %v913 = vld [vmem:[%s540 + $0x64] sm:$0xf]
        %v914 = vld [vmem:[%s540 + $0x68] sm:$0xf]
        %v915 = vld [vmem:[%s540 + $0x6c] sm:$0xf]
        %v916 = vld [vmem:[%s540 + $0x70] sm:$0xf]
        %v917 = vld [vmem:[%s540 + $0x74] sm:$0xf]
        %v918 = vld [vmem:[%s540 + $0x78] sm:$0xf]
        %v919 = vld [vmem:[%s540 + $0x7c] sm:$0xf]
        %v920 = vld [vmem:[%s543] sm:$0x1]
        %v922 = vperm.slane %v920, 0
        %v956 = vunpack.c.l.b16 %v888
        %v957 = vunpack.c.l.b16 %v889
        %v958 = vunpack.c.l.b16 %v890
        %v959 = vunpack.c.l.b16 %v891
        %v960 = vunpack.c.l.b16 %v892
        %v961 = vunpack.c.l.b16 %v893
        %v962 = vunpack.c.l.b16 %v894
        %v963 = vunpack.c.l.b16 %v895
        %v964 = vunpack.c.l.b16 %v896
        %v965 = vunpack.c.l.b16 %v897
        %v966 = vunpack.c.l.b16 %v898
        %v967 = vunpack.c.l.b16 %v899
        %v968 = vunpack.c.l.b16 %v900
        %v969 = vunpack.c.l.b16 %v901
        %v970 = vunpack.c.l.b16 %v902
        %v971 = vunpack.c.l.b16 %v903
        %v972 = vunpack.c.l.b16 %v904
        %v973 = vunpack.c.l.b16 %v905
        %v974 = vunpack.c.l.b16 %v906
        %v975 = vunpack.c.l.b16 %v907
        %v976 = vunpack.c.l.b16 %v908
        %v977 = vunpack.c.l.b16 %v909
        %v978 = vunpack.c.l.b16 %v910
        %v979 = vunpack.c.l.b16 %v911
        %v980 = vunpack.c.l.b16 %v912
        %v981 = vunpack.c.l.b16 %v913
        %v982 = vunpack.c.l.b16 %v914
        %v983 = vunpack.c.l.b16 %v915
        %v984 = vunpack.c.l.b16 %v916
        %v985 = vunpack.c.l.b16 %v917
        %v986 = vunpack.c.l.b16 %v918
        %v987 = vunpack.c.l.b16 %v919
        %v988 = vpack.c.b16 %v957, %v956
        %v989 = vpack.c.b16 %v959, %v958
        %v990 = vpack.c.b16 %v961, %v960
        %v991 = vpack.c.b16 %v963, %v962
        %v992 = vpack.c.b16 %v965, %v964
        %v993 = vpack.c.b16 %v967, %v966
        %v994 = vpack.c.b16 %v969, %v968
        %v995 = vpack.c.b16 %v971, %v970
        %v996 = vpack.c.b16 %v973, %v972
        %v997 = vpack.c.b16 %v975, %v974
        %v998 = vpack.c.b16 %v977, %v976
        %v999 = vpack.c.b16 %v979, %v978
        %v1000 = vpack.c.b16 %v981, %v980
        %v1001 = vpack.c.b16 %v983, %v982
        %v1002 = vpack.c.b16 %v985, %v984
        %v1003 = vpack.c.b16 %v987, %v986
        %1020 = vmatpush.bf16.msra.mxu0 %v995
        %1021 = vmatpush.bf16.msra.mxu0 %v994
        %1022 = vmatpush.bf16.msra.mxu0 %v993
        %1023 = vmatpush.bf16.msra.mxu0 %v992
        %1024 = vmatpush.bf16.msra.mxu0 %v991
        %1025 = vmatpush.bf16.msra.mxu0 %v990
        %1026 = vmatpush.bf16.msra.mxu0 %v989
        %1027 = vmatpush.bf16.msra.mxu0 %v988
        %1028 = vmatmul.bf16.gmra.mxu0 %v596
        %v1029 = vpop.f32.mrf.mxu0
        %v1030 = vadd.f32 %v922, %v1029
        %v1031 = vpop.f32.mrf.mxu0
        %v1032 = vadd.f32 %v922, %v1031
        %1033 = vdwg.mxu0
        %1034 = vmatpush.bf16.msra.mxu0 %v1003
        %1035 = vmatpush.bf16.msra.mxu0 %v1002
        %1036 = vmatpush.bf16.msra.mxu0 %v1001
        %1037 = vmatpush.bf16.msra.mxu0 %v1000
        %1038 = vmatpush.bf16.msra.mxu0 %v999
        %1039 = vmatpush.bf16.msra.mxu0 %v998
        %1040 = vmatpush.bf16.msra.mxu0 %v997
        %1041 = vmatpush.bf16.msra.mxu0 %v996
        %1042 = vmatmul.bf16.gmra.mxu0 %v597
        %v1043 = vpop.f32.mrf.mxu0
        %v1044 = vadd.f32 %v1030, %v1043
        %v1045 = vpop.f32.mrf.mxu0
        %v1046 = vadd.f32 %v1032, %v1045
        %1047 = vdwg.mxu0
        %v1048 = vpack.c.bf16 %v1044, %v1044
        %v1049 = vpack.c.bf16 %v1046, %v1046
        %v1050 = vld [vmem:[%s518] sm:$0x1]
        %v1051 = vld [vmem:[%s518 + $0x1] sm:$0x1]
        %v1054 = vperm.slane %v1050, 0
        %v1055 = vperm.slane %v1051, 0
        %vm1058 = vcmask 523264
        %v1060 = vsel %vm1058, %v724, 0
        %v1063 = vsel %vm1058, %v886, 0
        %1065 = vmatpush.bf16.xpose.msra.mxu0 0
        %1066 = vmatpush.bf16.xpose.msra.mxu0 0
        %1067 = vmatpush.bf16.xpose.msra.mxu0 0
        %1068 = vmatpush.bf16.xpose.msra.mxu0 0
        %1069 = vmatpush.bf16.xpose.msra.mxu0 0
        %1070 = vmatpush.bf16.xpose.msra.mxu0 0
        %1071 = vmatpush.bf16.xpose.msra.mxu0 0
        %1072 = vmatpush.bf16.xpose.msra.mxu0 %v1063
        %1073 = vmatmul.bf16.gmra.mxu0 %v1060
        %v1074 = vpop.f32.mrf.mxu0
        %v1075 = vadd.f32 %v1054, %v1074
        %v1076 = vpop.f32.mrf.mxu0
        %1077 = vdwg.mxu0
        %v1079 = vsel %vm1058, %v725, 0
        %v1082 = vsel %vm1058, %v887, 0
        %1084 = vmatpush.bf16.xpose.msra.mxu0 0
        %1085 = vmatpush.bf16.xpose.msra.mxu0 0
        %1086 = vmatpush.bf16.xpose.msra.mxu0 0
        %1087 = vmatpush.bf16.xpose.msra.mxu0 0
        %1088 = vmatpush.bf16.xpose.msra.mxu0 0
        %1089 = vmatpush.bf16.xpose.msra.mxu0 0
        %1090 = vmatpush.bf16.xpose.msra.mxu0 0
        %1091 = vmatpush.bf16.xpose.msra.mxu0 %v1082
        %1092 = vmatmul.bf16.gmra.mxu0 %v1079
        %v1093 = vpop.f32.mrf.mxu0
        %v1094 = vadd.f32 %v1055, %v1093
        %v1095 = vpop.f32.mrf.mxu0
        %1096 = vdwg.mxu0
        %vm1097 = vcmask 64512
        %v1098 = vsel %vm1097, %v1075, -inf
        %1099 = vmax.xlane.f32.xlu0 %v1098
        %v1100 = vpop.xlane.xlu0 %1099
        %v1101 = vsel %vm1097, %v1094, -inf
        %1102 = vmax.xlane.f32.xlu0 %v1101
        %v1103 = vpop.xlane.xlu0 %1102
        %v1104 = vsub.f32 %v1075, %v1100
        %v1105 = vsub.f32 %v1094, %v1103
        %v1106 = vmul.f32 %v1104, 1.442695
        %v1107 = vpow.pop %v1106
        %v1108 = vmul.f32 %v1105, 1.442695
        %v1109 = vpow.pop %v1108
        %v1110 = vsel %vm1097, %v1107, 0.0
        %1111 = vadd.xlane.f32.xlu0 %v1110
        %v1112 = vpop.xlane.xlu0 %1111
        %v1113 = vsel %vm1097, %v1109, 0.0
        %1114 = vadd.xlane.f32.xlu0 %v1113
        %v1115 = vpop.xlane.xlu0 %1114
        %v1116 = vrcp.pop %v1112
        %v1117 = vrcp.pop %v1115
        %v1118 = vmul.f32 %v1107, %v1116
        %v1119 = vmul.f32 %v1109, %v1117
        %1120 = vst.msk [vmem:[%s507] sm:$0xff] %vm1097, %v1118
        %1121 = vst.msk [vmem:[%s507 + $0x8] sm:$0xff] %vm1097, %v1119
        %v1122 = vpack.c.bf16 %v1118, %v1118
        %v1123 = vpack.c.bf16 %v1119, %v1119
        %v1125 = vsel %vm1097, %v1122, 0
        %vm1127 = vcmask 1043456
        %v1129 = vsel %vm1127, %v1048, 0
        %1131 = vmatpush.bf16.msra.mxu0 0
        %1132 = vmatpush.bf16.msra.mxu0 0
        %1133 = vmatpush.bf16.msra.mxu0 0
        %1134 = vmatpush.bf16.msra.mxu0 0
        %1135 = vmatpush.bf16.msra.mxu0 0
        %1136 = vmatpush.bf16.msra.mxu0 0
        %1137 = vmatpush.bf16.msra.mxu0 0
        %1138 = vmatpush.bf16.msra.mxu0 %v1129
        %1139 = vmatmul.bf16.gmra.mxu0 %v1125
        %v1140 = vpop.f32.mrf.mxu0
        %v1141 = vadd.f32 0.0, %v1140
        %v1142 = vpop.f32.mrf.mxu0
        %1143 = vdwg.mxu0
        %v1145 = vsel %vm1097, %v1123, 0
        %v1148 = vsel %vm1127, %v1049, 0
        %1150 = vmatpush.bf16.msra.mxu0 0
        %1151 = vmatpush.bf16.msra.mxu0 0
        %1152 = vmatpush.bf16.msra.mxu0 0
        %1153 = vmatpush.bf16.msra.mxu0 0
        %1154 = vmatpush.bf16.msra.mxu0 0
        %1155 = vmatpush.bf16.msra.mxu0 0
        %1156 = vmatpush.bf16.msra.mxu0 0
        %1157 = vmatpush.bf16.msra.mxu0 %v1148
        %1158 = vmatmul.bf16.gmra.mxu0 %v1145
        %v1159 = vpop.f32.mrf.mxu0
        %v1160 = vadd.f32 0.0, %v1159
        %v1161 = vpop.f32.mrf.mxu0
        %1162 = vdwg.mxu0
        %v1163 = vpack.c.bf16 %v1160, %v1141
        %v1164 = vld [vmem:[%s548] sm:$0xff]
        %v1165 = vld [vmem:[%s548 + $0x8] sm:$0xff]
        %v1166 = vld [vmem:[%s548 + $0x10] sm:$0xff]
        %v1167 = vld [vmem:[%s548 + $0x18] sm:$0xff]
        %v1168 = vld [vmem:[%s548 + $0x20] sm:$0xff]
        %v1169 = vld [vmem:[%s548 + $0x28] sm:$0xff]
        %v1170 = vld [vmem:[%s548 + $0x30] sm:$0xff]
        %v1171 = vld [vmem:[%s548 + $0x38] sm:$0xff]
        %v1180 = vunpack.c.l.b16 %v1164
        %v1181 = vunpack.c.h.b16 %v1164
        %v1182 = vunpack.c.l.b16 %v1165
        %v1183 = vunpack.c.h.b16 %v1165
        %v1184 = vunpack.c.l.b16 %v1166
        %v1185 = vunpack.c.h.b16 %v1166
        %v1186 = vunpack.c.l.b16 %v1167
        %v1187 = vunpack.c.h.b16 %v1167
        %v1188 = vunpack.c.l.b16 %v1168
        %v1189 = vunpack.c.h.b16 %v1168
        %v1190 = vunpack.c.l.b16 %v1169
        %v1191 = vunpack.c.h.b16 %v1169
        %v1192 = vunpack.c.l.b16 %v1170
        %v1193 = vunpack.c.h.b16 %v1170
        %v1194 = vunpack.c.l.b16 %v1171
        %v1195 = vunpack.c.h.b16 %v1171
        %v1196 = vpack.c.b16 %v1182, %v1180
        %v1197 = vpack.c.b16 %v1183, %v1181
        %v1198 = vpack.c.b16 %v1186, %v1184
        %v1199 = vpack.c.b16 %v1187, %v1185
        %v1200 = vpack.c.b16 %v1190, %v1188
        %v1201 = vpack.c.b16 %v1191, %v1189
        %v1202 = vpack.c.b16 %v1194, %v1192
        %v1203 = vpack.c.b16 %v1195, %v1193
        %v1213 = vsel %vm1058, %v1163, 0
        %1215 = vmatpush.bf16.msra.mxu0 0
        %1216 = vmatpush.bf16.msra.mxu0 0
        %1217 = vmatpush.bf16.msra.mxu0 0
        %1218 = vmatpush.bf16.msra.mxu0 0
        %1219 = vmatpush.bf16.msra.mxu0 %v1202
        %1220 = vmatpush.bf16.msra.mxu0 %v1200
        %1221 = vmatpush.bf16.msra.mxu0 %v1198
        %1222 = vmatpush.bf16.msra.mxu0 %v1196
        %1223 = vmatmul.bf16.gmra.mxu0 %v1213
        %v1224 = vpop.f32.mrf.mxu0
        %v1225 = vadd.f32 0.0, %v1224
        %v1226 = vpop.f32.mrf.mxu0
        %v1227 = vadd.f32 0.0, %v1226
        %1228 = vdwg.mxu0
        %1229 = vmatpush.bf16.msra.mxu0 0
        %1230 = vmatpush.bf16.msra.mxu0 0
        %1231 = vmatpush.bf16.msra.mxu0 0
        %1232 = vmatpush.bf16.msra.mxu0 0
        %1233 = vmatpush.bf16.msra.mxu0 %v1203
        %1234 = vmatpush.bf16.msra.mxu0 %v1201
        %1235 = vmatpush.bf16.msra.mxu0 %v1199
        %1236 = vmatpush.bf16.msra.mxu0 %v1197
        %1237 = vmatmul.bf16.gmra.mxu0 %v1213
        %v1238 = vpop.f32.mrf.mxu0
        %v1239 = vadd.f32 0.0, %v1238
        %v1240 = vpop.f32.mrf.mxu0
        %v1241 = vadd.f32 0.0, %v1240
        %1242 = vdwg.mxu0
        %p1243 = scmp.eq.s32.totalorder %s32, 0
        // Predicated region
        $region61: #{_mha_impl.1} parent=59 // pred_check
          %p1244 = pneg %p1243
        $region62: #{_mha_impl.1} parent=59 // pred_check_branch
          %1246 = sbr.rel (%p1244) target = $region64
        $region63: #{_mha_impl.1} parent=59 // pred_region
          %v1247 = vld [vmem:[%s9] sm:$0x3]
          %v1249 = vperm.slane %v1247, 0
          %v1250 = vperm.slane %v1247, 1
          %v1253 = vadd.f32 %v1225, %v1249
          %v1254 = vadd.f32 %v1239, %v1250
          %v1255 = vadd.f32 %v1227, %v1249
          %v1256 = vadd.f32 %v1241, %v1250
          %1257 = vst [vmem:[#allocation2] sm:$0xff] %v1253
          %1258 = vst [vmem:[#allocation2 + $0x8] sm:$0xff] %v1254
          %1259 = vst [vmem:[#allocation2 + $0x10] sm:$0xff] %v1255
          %1260 = vst [vmem:[#allocation2 + $0x18] sm:$0xff] %v1256
        $region64: #{_mha_impl.1} parent=59 // pred_fallthru
          _
        %p1261 = scmp.ne.s32.totalorder %s32, 0
        // Predicated region
        $region65: #{_mha_impl.1} parent=59 // pred_check
          %p1262 = pneg %p1261
        $region66: #{_mha_impl.1} parent=59 // pred_check_branch
          %1264 = sbr.rel (%p1262) target = $region68
        $region67: #{_mha_impl.1} parent=59 // pred_region
          %v1265 = vld [vmem:[#allocation2] sm:$0xff]
          %v1266 = vld [vmem:[#allocation2 + $0x8] sm:$0xff]
          %v1267 = vld [vmem:[#allocation2 + $0x10] sm:$0xff]
          %v1268 = vld [vmem:[#allocation2 + $0x18] sm:$0xff]
          %v1269 = vadd.f32 %v1265, %v1225
          %v1270 = vadd.f32 %v1266, %v1239
          %v1271 = vadd.f32 %v1267, %v1227
          %v1272 = vadd.f32 %v1268, %v1241
          %1273 = vst [vmem:[#allocation2] sm:$0xff] %v1269
          %1274 = vst [vmem:[#allocation2 + $0x8] sm:$0xff] %v1270
          %1275 = vst [vmem:[#allocation2 + $0x10] sm:$0xff] %v1271
          %1276 = vst [vmem:[#allocation2 + $0x18] sm:$0xff] %v1272
        $region68: #{_mha_impl.1} parent=59 // pred_fallthru
          _
        %s1277 = sand.u32 %s330, 1
        %s1278 = scalar_lea.sflag [#allocation5], %s1277
        %s1279 = sand.u32 %s330, 1
        %s1280 = smul.addr %s1279, 16
        %s1281 = scalar_lea.vmem [#allocation4], %s1280
        // Predicated region
        $region69: #{_mha_impl.1} parent=59 // pred_check
          %p1282 = pneg %p312
        $region70: #{_mha_impl.1} parent=59 // pred_check_branch
          %1284 = sbr.rel (%p1282) target = $region72
        $region71: #{_mha_impl.1} parent=59 // pred_region
          %s1285 = smul.u32 2, %s31
          %1287 = vsyncadd [#allocation3], 0
          %s1288 = smul.addr %s1285, 2
          %s1289 = smul.addr %s1288, 8
          %s1290 = scalar_lea.hbm %s10, %s1289
          %s1291 = sshll.u32 [#allocation2], 4
          %s1292 = int_to_ptr.vmem [resolvable:$true] %s1291
          %s1293 = sshll.u32 %s1290, 4
          %s1294 = int_to_ptr.hbm [resolvable:$true] %s1293
          %1299 = dma.vmem_to_hbm [thread:$0]  %s1292, 512, %s1294, [#allocation3], 256, 256, 16
        $region72: #{_mha_impl.1} parent=59 // pred_fallthru
          _
        // Predicated region
        $region73: #{_mha_impl.1} parent=59 // pred_check
          %p1300 = pneg %p340
        $region74: #{_mha_impl.1} parent=59 // pred_check_branch
          %1302 = sbr.rel (%p1300) target = $region76
        $region75: #{_mha_impl.1} parent=59 // pred_region
          %s1303 = smul.u32 2, %s31
          %1305 = vsyncadd %s1278, 0
          %s1306 = smul.addr %s1303, 4
          %s1307 = sadd.s32 %s32, %s1306
          %s1308 = smul.addr %s1307, 8
          %s1309 = scalar_lea.hbm %s11, %s1308
          %s1310 = sshll.u32 %s1281, 4
          %s1311 = int_to_ptr.vmem [resolvable:$true] %s1310
          %s1312 = sshll.u32 %s1309, 4
          %s1313 = int_to_ptr.hbm [resolvable:$true] %s1312
          %1318 = dma.vmem_to_hbm [thread:$0]  %s1311, 256, %s1313, %s1278, 128, 512, 8
        $region76: #{_mha_impl.1} parent=59 // pred_fallthru
          _
        // Predicated region
        $region77: #{_mha_impl.1} parent=59 // pred_check
          %p1319 = pneg %p312
        $region78: #{_mha_impl.1} parent=59 // pred_check_branch
          %1321 = sbr.rel (%p1319) target = $region80
        $region79: #{_mha_impl.1} parent=59 // pred_region
          %1323 = dma.done [#allocation3], 512
        $region80: #{_mha_impl.1} parent=59 // pred_fallthru
          _
      $region60: #{_mha_impl.1} parent=5 // pred_fallthru
        _
      %p1324 = scmp.le.s32.totalorder 2, %s22
      // Predicated region
      $region81: #{_mha_impl.1} parent=5 // pred_check
        %p1325 = pneg %p1324
      $region82: #{_mha_impl.1} parent=5 // pred_check_branch
        %1327 = sbr.rel (%p1325) target = $region84
      $region83: #{_mha_impl.1} parent=5 // pred_region
        %s1328 = ssub.s32 %s22, 2
        // Predicated region
        $region85: #{_mha_impl.1} parent=83 // pred_check
          %p1329 = pneg %p346
        $region86: #{_mha_impl.1} parent=83 // pred_check_branch
          %1331 = sbr.rel (%p1329) target = $region88
        $region87: #{_mha_impl.1} parent=83 // pred_region
          %s1332 = sand.u32 %s331, 1
          %s1333 = scalar_lea.sflag [#allocation5], %s1332
          %s1334 = sand.u32 %s331, 1
          %s1335 = smul.addr %s1334, 16
          %s1336 = scalar_lea.vmem [#allocation4], %s1335
          %1338 = dma.done %s1333, 256
        $region88: #{_mha_impl.1} parent=83 // pred_fallthru
          _
      $region84: #{_mha_impl.1} parent=5 // pred_fallthru
        _
    $region6: #{_mha_impl.1} parent=1 // loop_footer
      %s26 = sadd.s32 1, %s22
    $region7: #{_mha_impl.1} parent=1 // loop_footer_branch
      %21 = sbr.rel target = $region3
    $region8: #{_mha_impl.1} parent=1 // loop_exit
      _
    %1339 = vsyncpa [#allocation3], 1
    %s1340 = scalar_lea.sflag [#allocation3], 1
    %1341 = vsyncpa %s1340, 1
    %1342 = vsyncpa [#allocation5], 1
    %s1343 = scalar_lea.sflag [#allocation5], 1
    %1344 = vsyncpa %s1343, 1

</llo_original>
